<compile_context>
chip_gen: v7x
topology: tpu7x:2x2x1
jax: 0.10.0
libtpu: 0.0.40
codegen_flags: <defaults>
</compile_context>

<pallas_src>
import jax
import jax.numpy as jnp
from jax.experimental import pallas as pl
from jax.experimental.pallas import tpu as pltpu


def _mlp_kernel(x_ref,
                w1_ref, b1_ref, w2_ref, b2_ref, w3_ref, b3_ref,
                w4_ref, b4_ref, w5_ref, b5_ref, w6_ref, b6_ref,
                out_ref):
    """Fused forward pass: 5x (Linear + ReLU) followed by the final Linear."""
    # fc1 in f32: K=16 so the MXU cost is negligible, and un-normalized input
    # features keep full precision.
    h = x_ref[...]                                                    # (tile, in_dim) f32
    h = jnp.dot(h, w1_ref[...], preferred_element_type=jnp.float32) + b1_ref[...]
    h = jnp.maximum(h, 0.0)                                           # relu (dropout = id)

    # fc2..fc5: bf16 operands -> native-rate MXU, f32 accumulation, f32 biases.
    for w_ref, b_ref in ((w2_ref, b2_ref), (w3_ref, b3_ref),
                         (w4_ref, b4_ref), (w5_ref, b5_ref)):
        h = jnp.dot(h.astype(jnp.bfloat16), w_ref[...],
                    preferred_element_type=jnp.float32) + b_ref[...]
        h = jnp.maximum(h, 0.0)                                       # relu (dropout = id)

    # fc6 (32 -> 1) on VPU + XLU: elementwise multiply by the (1, 32) weight row
    # and reduce across 32 lanes.  Skips a 6th MXU pass and keeps f32 precision.
    y = jnp.sum(h * w6_ref[...], axis=-1, keepdims=True) + b6_ref[...]
    out_ref[...] = y.astype(out_ref.dtype)                            # compact (tile, 1) store


def _choose_batch_tile(batch, batch_tile):
    """Largest-that-fits tiling: one full-batch tile when possible, else batch_tile.

    No forced >=2 split: on single-TC chips (v5e/v6e) the grid is a serial loop,
    so extra steps are pure overhead.  Large batches still yield multiple
    "parallel" steps for v7x megacore automatically.
    """
    if batch <= batch_tile:
        return batch                       # full-dim block is always legal
    return max(8, (batch_tile // 8) * 8)   # block 2nd-to-last dim must be 8-aligned


def car_price_forward(x, prepared_params, *, batch_tile=2048):
    """Run the CarPriceModel forward pass via a single pallas_call.

    x: (B, input_dim) float32
    prepared_params: flat tuple from prepare_params() (kernel-ready dtypes/shapes)
    """
    B, in_dim = x.shape
    tile = _choose_batch_tile(B, batch_tile)
    grid = (pl.cdiv(B, tile),)

    in_specs = [pl.BlockSpec((tile, in_dim), lambda i: (i, 0))]
    for p in prepared_params:
        # Constant (0, 0) index map: weights/biases stay resident in VMEM and are
        # not re-DMA'd after the first grid step.
        in_specs.append(pl.BlockSpec(p.shape, lambda i: (0, 0)))

    out_specs = pl.BlockSpec((tile, 1), lambda i: (i, 0))

    compiler_kwargs = dict(dimension_semantics=("parallel",))
    if tile >= 1024:
        # Peak live VMEM at tile=2048 is ~10 MiB (fc1 f32 activation dominates at
        # 4 MiB); 32 MiB covers v5e's 16 MiB scoped default and stays well inside
        # v7x's 64 MiB physical VMEM.
        compiler_kwargs["vmem_limit_bytes"] = 32 * 1024 * 1024

    return pl.pallas_call(
        _mlp_kernel,
        out_shape=jax.ShapeDtypeStruct((B, 1), jnp.float32),
        grid_spec=pltpu.PrefetchScalarGridSpec(
            num_scalar_prefetch=0,
            grid=grid,
            in_specs=in_specs,
            out_specs=out_specs,
        ),
        compiler_params=pltpu.CompilerParams(**compiler_kwargs),
    )(x, *prepared_params)


def prepare_params(params):
    """One-time conversion of (W, b) pairs into kernel-ready arrays.

    Done once (not per forward call) so no convert/pad XLA ops precede the kernel.
      * fc1 weight stays f32 (accuracy, K=16 is free)
      * fc2..fc5 weights -> bf16 (halves weight DMA, native MXU rate)
      * fc6 weight (32, 1) -> (1, 32) f32 row for the VPU multiply + lane reduce
      * all biases stay f32, shaped (1, out_dim)
    """
    (w1, b1), (w2, b2), (w3, b3), (w4, b4), (w5, b5), (w6, b6) = params
    flat = [w1.astype(jnp.float32), b1.astype(jnp.float32).reshape(1, -1)]
    for w, b in ((w2, b2), (w3, b3), (w4, b4), (w5, b5)):
        flat += [w.astype(jnp.bfloat16), b.astype(jnp.float32).reshape(1, -1)]
    flat += [w6.astype(jnp.float32).reshape(1, -1),   # (32,1) column -> (1,32) row
             b6.astype(jnp.float32).reshape(1, 1)]
    return tuple(jax.device_put(p) for p in flat)


def init_params(key, input_dim):
    """Deterministic init matching the nn.Linear shapes of CarPriceModel."""
    dims = [input_dim, 512, 256, 128, 64, 32, 1]
    params = []
    for d_in, d_out in zip(dims[:-1], dims[1:]):
        key, kw, kb = jax.random.split(key, 3)
        bound = 1.0 / (d_in ** 0.5)  # same scale as torch.nn.Linear default init
        w = jax.random.uniform(kw, (d_in, d_out), jnp.float32, -bound, bound)
        b = jax.random.uniform(kb, (1, d_out), jnp.float32, -bound, bound)
        params.append((w, b))
    return params


def reference_forward(x, params):
    """Pure-JAX reference using the same numerics as the kernel
    (fc1 f32, fc2..fc5 bf16-operand / f32-accumulate, fc6 f32)."""
    (w1, b1), (w2, b2), (w3, b3), (w4, b4), (w5, b5), (w6, b6) = params
    h = jnp.maximum(jnp.dot(x, w1) + b1, 0.0)
    for w, b in ((w2, b2), (w3, b3), (w4, b4), (w5, b5)):
        y = jnp.dot(h.astype(jnp.bfloat16), w.astype(jnp.bfloat16),
                    preferred_element_type=jnp.float32) + b
        h = jnp.maximum(y, 0.0)
    return jnp.dot(h, w6) + b6


if __name__ == "__main__":
    INPUT_DIM = 16
    BATCH = 256   # small demo batch; fits in a single grid step

    key = jax.random.PRNGKey(0)
    key, kx = jax.random.split(key)
    x = jax.random.normal(kx, (BATCH, INPUT_DIM), jnp.float32)

    params = init_params(key, INPUT_DIM)
    prepared = prepare_params(params)   # one-time weight prep, outside the hot path

    out = car_price_forward(x, prepared)
    out = jax.block_until_ready(out)

    ref = reference_forward(x, params)
    assert out.shape == (BATCH, 1)
    assert jnp.allclose(out, ref, atol=2e-2, rtol=2e-2), "mismatch vs reference"

    print("KERNEL_OK")
</pallas_src>

<mosaic_0001>
module attributes {stable_mosaic.version = 11 : i64} {
  func.func @_mlp_kernel(%arg0: i32, %arg1: memref<256x16xf32, #tpu.memory_space<vmem>>, %arg2: memref<16x512xf32, #tpu.memory_space<vmem>>, %arg3: memref<1x512xf32, #tpu.memory_space<vmem>>, %arg4: memref<512x256xbf16, #tpu.memory_space<vmem>>, %arg5: memref<1x256xf32, #tpu.memory_space<vmem>>, %arg6: memref<256x128xbf16, #tpu.memory_space<vmem>>, %arg7: memref<1x128xf32, #tpu.memory_space<vmem>>, %arg8: memref<128x64xbf16, #tpu.memory_space<vmem>>, %arg9: memref<1x64xf32, #tpu.memory_space<vmem>>, %arg10: memref<64x32xbf16, #tpu.memory_space<vmem>>, %arg11: memref<1x32xf32, #tpu.memory_space<vmem>>, %arg12: memref<1x32xf32, #tpu.memory_space<vmem>>, %arg13: memref<1x1xf32, #tpu.memory_space<vmem>>, %arg14: memref<256x1xf32, #tpu.memory_space<vmem>>) attributes {dimension_semantics = [#tpu.dimension_semantics<parallel>], iteration_bounds = array<i64: 1>, scalar_prefetch = 0 : i64, scratch_operands = 0 : i64, tpu.core_type = #tpu.core_type<tc>, window_params = [{transform_indices = @transform_0, window_bounds = array<i64: 256, 16>}, {pipeline_mode = #tpu.pipeline_mode<synchronous>, transform_indices = @transform_1, window_bounds = array<i64: 16, 512>}, {pipeline_mode = #tpu.pipeline_mode<synchronous>, transform_indices = @transform_2, window_bounds = array<i64: 1, 512>}, {pipeline_mode = #tpu.pipeline_mode<synchronous>, transform_indices = @transform_3, window_bounds = array<i64: 512, 256>}, {pipeline_mode = #tpu.pipeline_mode<synchronous>, transform_indices = @transform_4, window_bounds = array<i64: 1, 256>}, {pipeline_mode = #tpu.pipeline_mode<synchronous>, transform_indices = @transform_5, window_bounds = array<i64: 256, 128>}, {pipeline_mode = #tpu.pipeline_mode<synchronous>, transform_indices = @transform_6, window_bounds = array<i64: 1, 128>}, {pipeline_mode = #tpu.pipeline_mode<synchronous>, transform_indices = @transform_7, window_bounds = array<i64: 128, 64>}, {pipeline_mode = #tpu.pipeline_mode<synchronous>, transform_indices = @transform_8, window_bounds = array<i64: 1, 64>}, {pipeline_mode = #tpu.pipeline_mode<synchronous>, transform_indices = @transform_9, window_bounds = array<i64: 64, 32>}, {pipeline_mode = #tpu.pipeline_mode<synchronous>, transform_indices = @transform_10, window_bounds = array<i64: 1, 32>}, {pipeline_mode = #tpu.pipeline_mode<synchronous>, transform_indices = @transform_11, window_bounds = array<i64: 1, 32>}, {pipeline_mode = #tpu.pipeline_mode<synchronous>, transform_indices = @transform_12, window_bounds = array<i64: 1, 1>}, {transform_indices = @transform_13, window_bounds = array<i64: 256, 1>}]} {
    %c0 = arith.constant 0 : index
    %c0_0 = arith.constant 0 : index
    %0 = vector.load %arg1[%c0, %c0_0] : memref<256x16xf32, #tpu.memory_space<vmem>>, vector<256x16xf32>
    %c0_1 = arith.constant 0 : index
    %c0_2 = arith.constant 0 : index
    %1 = vector.load %arg2[%c0_1, %c0_2] : memref<16x512xf32, #tpu.memory_space<vmem>>, vector<16x512xf32>
    %cst = arith.constant dense<0.000000e+00> : vector<256x512xf32>
    %2 = tpu.matmul %0, %1, %cst {dimension_numbers = #tpu.dot_dimension_numbers<[1], [0], [0], [1], [0, 0, 1, 1], [], []>} : vector<256x16xf32>, vector<16x512xf32>, vector<256x512xf32> -> vector<256x512xf32>
    %c0_3 = arith.constant 0 : index
    %c0_4 = arith.constant 0 : index
    %3 = vector.load %arg3[%c0_3, %c0_4] : memref<1x512xf32, #tpu.memory_space<vmem>>, vector<1x512xf32>
    %4 = vector.broadcast %3 : vector<1x512xf32> to vector<256x512xf32>
    %5 = arith.addf %2, %4 : vector<256x512xf32>
    %cst_5 = arith.constant 0.000000e+00 : f32
    %6 = vector.broadcast %cst_5 : f32 to vector<256x512xf32>
    %7 = arith.maximumf %5, %6 : vector<256x512xf32>
    %8 = arith.truncf %7 : vector<256x512xf32> to vector<256x512xbf16>
    %c0_6 = arith.constant 0 : index
    %c0_7 = arith.constant 0 : index
    %9 = vector.load %arg4[%c0_6, %c0_7] : memref<512x256xbf16, #tpu.memory_space<vmem>>, vector<512x256xbf16>
    %cst_8 = arith.constant dense<0.000000e+00> : vector<256x256xf32>
    %10 = tpu.matmul %8, %9, %cst_8 {dimension_numbers = #tpu.dot_dimension_numbers<[1], [0], [0], [1], [0, 0, 1, 1], [], []>} : vector<256x512xbf16>, vector<512x256xbf16>, vector<256x256xf32> -> vector<256x256xf32>
    %c0_9 = arith.constant 0 : index
    %c0_10 = arith.constant 0 : index
    %11 = vector.load %arg5[%c0_9, %c0_10] : memref<1x256xf32, #tpu.memory_space<vmem>>, vector<1x256xf32>
    %12 = vector.broadcast %11 : vector<1x256xf32> to vector<256x256xf32>
    %13 = arith.addf %10, %12 : vector<256x256xf32>
    %cst_11 = arith.constant 0.000000e+00 : f32
    %14 = vector.broadcast %cst_11 : f32 to vector<256x256xf32>
    %15 = arith.maximumf %13, %14 : vector<256x256xf32>
    %16 = arith.truncf %15 : vector<256x256xf32> to vector<256x256xbf16>
    %c0_12 = arith.constant 0 : index
    %c0_13 = arith.constant 0 : index
    %17 = vector.load %arg6[%c0_12, %c0_13] : memref<256x128xbf16, #tpu.memory_space<vmem>>, vector<256x128xbf16>
    %cst_14 = arith.constant dense<0.000000e+00> : vector<256x128xf32>
    %18 = tpu.matmul %16, %17, %cst_14 {dimension_numbers = #tpu.dot_dimension_numbers<[1], [0], [0], [1], [0, 0, 1, 1], [], []>} : vector<256x256xbf16>, vector<256x128xbf16>, vector<256x128xf32> -> vector<256x128xf32>
    %c0_15 = arith.constant 0 : index
    %c0_16 = arith.constant 0 : index
    %19 = vector.load %arg7[%c0_15, %c0_16] : memref<1x128xf32, #tpu.memory_space<vmem>>, vector<1x128xf32>
    %20 = vector.broadcast %19 : vector<1x128xf32> to vector<256x128xf32>
    %21 = arith.addf %18, %20 : vector<256x128xf32>
    %cst_17 = arith.constant 0.000000e+00 : f32
    %22 = vector.broadcast %cst_17 : f32 to vector<256x128xf32>
    %23 = arith.maximumf %21, %22 : vector<256x128xf32>
    %24 = arith.truncf %23 : vector<256x128xf32> to vector<256x128xbf16>
    %c0_18 = arith.constant 0 : index
    %c0_19 = arith.constant 0 : index
    %25 = vector.load %arg8[%c0_18, %c0_19] : memref<128x64xbf16, #tpu.memory_space<vmem>>, vector<128x64xbf16>
    %cst_20 = arith.constant dense<0.000000e+00> : vector<256x64xf32>
    %26 = tpu.matmul %24, %25, %cst_20 {dimension_numbers = #tpu.dot_dimension_numbers<[1], [0], [0], [1], [0, 0, 1, 1], [], []>} : vector<256x128xbf16>, vector<128x64xbf16>, vector<256x64xf32> -> vector<256x64xf32>
    %c0_21 = arith.constant 0 : index
    %c0_22 = arith.constant 0 : index
    %27 = vector.load %arg9[%c0_21, %c0_22] : memref<1x64xf32, #tpu.memory_space<vmem>>, vector<1x64xf32>
    %28 = vector.broadcast %27 : vector<1x64xf32> to vector<256x64xf32>
    %29 = arith.addf %26, %28 : vector<256x64xf32>
    %cst_23 = arith.constant 0.000000e+00 : f32
    %30 = vector.broadcast %cst_23 : f32 to vector<256x64xf32>
    %31 = arith.maximumf %29, %30 : vector<256x64xf32>
    %32 = arith.truncf %31 : vector<256x64xf32> to vector<256x64xbf16>
    %c0_24 = arith.constant 0 : index
    %c0_25 = arith.constant 0 : index
    %33 = vector.load %arg10[%c0_24, %c0_25] : memref<64x32xbf16, #tpu.memory_space<vmem>>, vector<64x32xbf16>
    %cst_26 = arith.constant dense<0.000000e+00> : vector<256x32xf32>
    %34 = tpu.matmul %32, %33, %cst_26 {dimension_numbers = #tpu.dot_dimension_numbers<[1], [0], [0], [1], [0, 0, 1, 1], [], []>} : vector<256x64xbf16>, vector<64x32xbf16>, vector<256x32xf32> -> vector<256x32xf32>
    %c0_27 = arith.constant 0 : index
    %c0_28 = arith.constant 0 : index
    %35 = vector.load %arg11[%c0_27, %c0_28] : memref<1x32xf32, #tpu.memory_space<vmem>>, vector<1x32xf32>
    %36 = vector.broadcast %35 : vector<1x32xf32> to vector<256x32xf32>
    %37 = arith.addf %34, %36 : vector<256x32xf32>
    %cst_29 = arith.constant 0.000000e+00 : f32
    %38 = vector.broadcast %cst_29 : f32 to vector<256x32xf32>
    %39 = arith.maximumf %37, %38 : vector<256x32xf32>
    %c0_30 = arith.constant 0 : index
    %c0_31 = arith.constant 0 : index
    %40 = vector.load %arg12[%c0_30, %c0_31] : memref<1x32xf32, #tpu.memory_space<vmem>>, vector<1x32xf32>
    %41 = vector.broadcast %40 : vector<1x32xf32> to vector<256x32xf32>
    %42 = arith.mulf %39, %41 : vector<256x32xf32>
    %cst_32 = arith.constant dense<0.000000e+00> : vector<256xf32>
    %43 = vector.multi_reduction <add>, %42, %cst_32 [1] : vector<256x32xf32> to vector<256xf32>
    %44 = vector.shape_cast %43 : vector<256xf32> to vector<256x1xf32>
    %c0_33 = arith.constant 0 : index
    %c0_34 = arith.constant 0 : index
    %45 = vector.load %arg13[%c0_33, %c0_34] : memref<1x1xf32, #tpu.memory_space<vmem>>, vector<1x1xf32>
    %46 = vector.broadcast %45 : vector<1x1xf32> to vector<256x1xf32>
    %47 = arith.addf %44, %46 : vector<256x1xf32>
    %c0_35 = arith.constant 0 : index
    %c0_36 = arith.constant 0 : index
    %48 = vector.load %arg14[%c0_35, %c0_36] : memref<256x1xf32, #tpu.memory_space<vmem>>, vector<256x1xf32>
    tpu.vector_store %arg14[%c0_35, %c0_36], %47 {strides = array<i32>} : memref<256x1xf32, #tpu.memory_space<vmem>>, vector<256x1xf32>,
    return
  }
  func.func @transform_0(%arg0: i32) -> (i32, i32) {
    %c0_i32 = arith.constant 0 : i32
    %c0_i32_0 = arith.constant 0 : i32
    return %arg0, %c0_i32 : i32, i32
  }
  func.func @transform_1(%arg0: i32) -> (i32, i32) {
    %c0_i32 = arith.constant 0 : i32
    %c0_i32_0 = arith.constant 0 : i32
    %c0_i32_1 = arith.constant 0 : i32
    return %c0_i32, %c0_i32_0 : i32, i32
  }
  func.func @transform_2(%arg0: i32) -> (i32, i32) {
    %c0_i32 = arith.constant 0 : i32
    %c0_i32_0 = arith.constant 0 : i32
    %c0_i32_1 = arith.constant 0 : i32
    return %c0_i32, %c0_i32_0 : i32, i32
  }
  func.func @transform_3(%arg0: i32) -> (i32, i32) {
    %c0_i32 = arith.constant 0 : i32
    %c0_i32_0 = arith.constant 0 : i32
    %c0_i32_1 = arith.constant 0 : i32
    return %c0_i32, %c0_i32_0 : i32, i32
  }
  func.func @transform_4(%arg0: i32) -> (i32, i32) {
    %c0_i32 = arith.constant 0 : i32
    %c0_i32_0 = arith.constant 0 : i32
    %c0_i32_1 = arith.constant 0 : i32
    return %c0_i32, %c0_i32_0 : i32, i32
  }
  func.func @transform_5(%arg0: i32) -> (i32, i32) {
    %c0_i32 = arith.constant 0 : i32
    %c0_i32_0 = arith.constant 0 : i32
    %c0_i32_1 = arith.constant 0 : i32
    return %c0_i32, %c0_i32_0 : i32, i32
  }
  func.func @transform_6(%arg0: i32) -> (i32, i32) {
    %c0_i32 = arith.constant 0 : i32
    %c0_i32_0 = arith.constant 0 : i32
    %c0_i32_1 = arith.constant 0 : i32
    return %c0_i32, %c0_i32_0 : i32, i32
  }
  func.func @transform_7(%arg0: i32) -> (i32, i32) {
    %c0_i32 = arith.constant 0 : i32
    %c0_i32_0 = arith.constant 0 : i32
    %c0_i32_1 = arith.constant 0 : i32
    return %c0_i32, %c0_i32_0 : i32, i32
  }
  func.func @transform_8(%arg0: i32) -> (i32, i32) {
    %c0_i32 = arith.constant 0 : i32
    %c0_i32_0 = arith.constant 0 : i32
    %c0_i32_1 = arith.constant 0 : i32
    return %c0_i32, %c0_i32_0 : i32, i32
  }
  func.func @transform_9(%arg0: i32) -> (i32, i32) {
    %c0_i32 = arith.constant 0 : i32
    %c0_i32_0 = arith.constant 0 : i32
    %c0_i32_1 = arith.constant 0 : i32
    return %c0_i32, %c0_i32_0 : i32, i32
  }
  func.func @transform_10(%arg0: i32) -> (i32, i32) {
    %c0_i32 = arith.constant 0 : i32
    %c0_i32_0 = arith.constant 0 : i32
    %c0_i32_1 = arith.constant 0 : i32
    return %c0_i32, %c0_i32_0 : i32, i32
  }
  func.func @transform_11(%arg0: i32) -> (i32, i32) {
    %c0_i32 = arith.constant 0 : i32
    %c0_i32_0 = arith.constant 0 : i32
    %c0_i32_1 = arith.constant 0 : i32
    return %c0_i32, %c0_i32_0 : i32, i32
  }
  func.func @transform_12(%arg0: i32) -> (i32, i32) {
    %c0_i32 = arith.constant 0 : i32
    %c0_i32_0 = arith.constant 0 : i32
    %c0_i32_1 = arith.constant 0 : i32
    return %c0_i32, %c0_i32_0 : i32, i32
  }
  func.func @transform_13(%arg0: i32) -> (i32, i32) {
    %c0_i32 = arith.constant 0 : i32
    %c0_i32_0 = arith.constant 0 : i32
    return %arg0, %c0_i32 : i32, i32
  }
}

</mosaic_0001>

<llo_original>
// kernel: tpu_custom_call.1
$region0: #{tpu_custom_call.1}
  #allocation0 [shape = 'u32[]', space=smem, size = 0x4, offset = 0x4, fixed_abs, tag = 'smem constant byte address 0x4 - core index']
  #allocation1 [shape = 'u32[144,128]{1,0:T(1,128)}', space=vmem, size = 0x12000, scoped, tag = 'internal scratch']
  #allocation2 [shape = 'f32[1,1]{1,0:T(1,128)S(1)}', space=vmem, size = 0x200, scoped, tag = 'scoped memory for tpu_custom_call.1']
  %s0 = inlined_call_operand.vmem [shape: f32[256,16], index: 0, kind: input, shape index: {}]
  %s1 = inlined_call_operand.vmem [shape: f32[16,512], index: 1, kind: input, shape index: {}]
  %s2 = inlined_call_operand.vmem [shape: f32[1,512], index: 2, kind: input, shape index: {}]
  %s3 = inlined_call_operand.hbm [shape: bf16[512,256], index: 3, kind: input, shape index: {}]
  %s4 = inlined_call_operand.vmem [shape: f32[1,256], index: 4, kind: input, shape index: {}]
  %s5 = inlined_call_operand.vmem [shape: bf16[256,128], index: 5, kind: input, shape index: {}]
  %s6 = inlined_call_operand.vmem [shape: f32[1,128], index: 6, kind: input, shape index: {}]
  %s7 = inlined_call_operand.vmem [shape: bf16[128,64], index: 7, kind: input, shape index: {}]
  %s8 = inlined_call_operand.vmem [shape: f32[1,64], index: 8, kind: input, shape index: {}]
  %s9 = inlined_call_operand.vmem [shape: bf16[64,32], index: 9, kind: input, shape index: {}]
  %s10 = inlined_call_operand.vmem [shape: f32[1,32], index: 10, kind: input, shape index: {}]
  %s11 = inlined_call_operand.vmem [shape: f32[1,32], index: 11, kind: input, shape index: {}]
  %s12 = inlined_call_operand.<no memory space> [shape: f32[1,1], index: 12, kind: input, shape index: {}]
  %s13 = inlined_call_operand.vmem [shape: f32[256,1], index: 13, kind: output, shape index: {}]
  %s14 = sld [smem:[#allocation0]]
  $region66: #{tpu_custom_call.1} parent=0
    _
  %s16 = ssub.s32 1, %s14
  %s17 = scalar_select 0, %s16, %s14
  %v18 = vstv %s12
  %19 = vst [vmem:[#allocation2] sm:$0x1] %v18
  $region1: #{tpu_custom_call.1} parent=0
    #allocation3 [shape = 'u8[262144]{0}', space=vmem, size = 0x40000, scoped, tag = 'input window, operand 3, single buffered']
    #allocation4 [shape = 's32[1]{0}', space=sflag, size = 0x4, scoped, tag = 'scoped memory for tpu_custom_call.1']
    %20 = vsyncpa [#allocation4], 0
    // Predicated region
    $region2: #{tpu_custom_call.1} parent=1 // pred_check
      _
    $region3: #{tpu_custom_call.1} parent=1 // pred_check_branch
      %22 = sbr.rel (0) target = $region5
    $region4: #{tpu_custom_call.1} parent=1 // pred_region
      _
    $region5: #{tpu_custom_call.1} parent=1 // pred_fallthru
      _
    // Predicated region
    $region6: #{tpu_custom_call.1} parent=1 // pred_check
      _
    $region7: #{tpu_custom_call.1} parent=1 // pred_check_branch
      %24 = sbr.rel (0) target = $region9
    $region8: #{tpu_custom_call.1} parent=1 // pred_region
      _
    $region9: #{tpu_custom_call.1} parent=1 // pred_fallthru
      _
    // Predicated region
    $region10: #{tpu_custom_call.1} parent=1 // pred_check
      _
    $region11: #{tpu_custom_call.1} parent=1 // pred_check_branch
      %26 = sbr.rel (0) target = $region13
    $region12: #{tpu_custom_call.1} parent=1 // pred_region
      _
    $region13: #{tpu_custom_call.1} parent=1 // pred_fallthru
      _
    // Predicated region
    $region14: #{tpu_custom_call.1} parent=1 // pred_check
      _
    $region15: #{tpu_custom_call.1} parent=1 // pred_check_branch
      %28 = sbr.rel (0) target = $region17
    $region16: #{tpu_custom_call.1} parent=1 // pred_region
      %s30 = ssub.s32 8192, 8192
      %31 = vsyncadd [#allocation4], %s30
      %s32 = sshll.u32 [#allocation3], 4
      %s33 = int_to_ptr.vmem [resolvable:$true] %s32
      %38 = dma.hbm_to_vmem [thread:$0]  %s3, 8192, %s33, [#allocation4], 128, 128, 8
    $region17: #{tpu_custom_call.1} parent=1 // pred_fallthru
      _
    // Predicated region
    $region18: #{tpu_custom_call.1} parent=1 // pred_check
      _
    $region19: #{tpu_custom_call.1} parent=1 // pred_check_branch
      %40 = sbr.rel (0) target = $region21
    $region20: #{tpu_custom_call.1} parent=1 // pred_region
      _
    $region21: #{tpu_custom_call.1} parent=1 // pred_fallthru
      _
    // Predicated region
    $region22: #{tpu_custom_call.1} parent=1 // pred_check
      _
    $region23: #{tpu_custom_call.1} parent=1 // pred_check_branch
      %42 = sbr.rel (0) target = $region25
    $region24: #{tpu_custom_call.1} parent=1 // pred_region
      _
    $region25: #{tpu_custom_call.1} parent=1 // pred_fallthru
      _
    // Predicated region
    $region26: #{tpu_custom_call.1} parent=1 // pred_check
      _
    $region27: #{tpu_custom_call.1} parent=1 // pred_check_branch
      %44 = sbr.rel (0) target = $region29
    $region28: #{tpu_custom_call.1} parent=1 // pred_region
      _
    $region29: #{tpu_custom_call.1} parent=1 // pred_fallthru
      _
    // Predicated region
    $region30: #{tpu_custom_call.1} parent=1 // pred_check
      _
    $region31: #{tpu_custom_call.1} parent=1 // pred_check_branch
      %46 = sbr.rel (0) target = $region33
    $region32: #{tpu_custom_call.1} parent=1 // pred_region
      _
    $region33: #{tpu_custom_call.1} parent=1 // pred_fallthru
      _
    // Predicated region
    $region34: #{tpu_custom_call.1} parent=1 // pred_check
      _
    $region35: #{tpu_custom_call.1} parent=1 // pred_check_branch
      %48 = sbr.rel (0) target = $region37
    $region36: #{tpu_custom_call.1} parent=1 // pred_region
      _
    $region37: #{tpu_custom_call.1} parent=1 // pred_fallthru
      _
    // Predicated region
    $region38: #{tpu_custom_call.1} parent=1 // pred_check
      _
    $region39: #{tpu_custom_call.1} parent=1 // pred_check_branch
      %50 = sbr.rel (0) target = $region41
    $region40: #{tpu_custom_call.1} parent=1 // pred_region
      _
    $region41: #{tpu_custom_call.1} parent=1 // pred_fallthru
      _
    // Predicated region
    $region42: #{tpu_custom_call.1} parent=1 // pred_check
      _
    $region43: #{tpu_custom_call.1} parent=1 // pred_check_branch
      %52 = sbr.rel (0) target = $region45
    $region44: #{tpu_custom_call.1} parent=1 // pred_region
      _
    $region45: #{tpu_custom_call.1} parent=1 // pred_fallthru
      _
    // Predicated region
    $region46: #{tpu_custom_call.1} parent=1 // pred_check
      _
    $region47: #{tpu_custom_call.1} parent=1 // pred_check_branch
      %54 = sbr.rel (0) target = $region49
    $region48: #{tpu_custom_call.1} parent=1 // pred_region
      _
    $region49: #{tpu_custom_call.1} parent=1 // pred_fallthru
      _
    // Predicated region
    $region50: #{tpu_custom_call.1} parent=1 // pred_check
      _
    $region51: #{tpu_custom_call.1} parent=1 // pred_check_branch
      %56 = sbr.rel (0) target = $region53
    $region52: #{tpu_custom_call.1} parent=1 // pred_region
      _
    $region53: #{tpu_custom_call.1} parent=1 // pred_fallthru
      _
    // Predicated region
    $region54: #{tpu_custom_call.1} parent=1 // pred_check
      _
    $region55: #{tpu_custom_call.1} parent=1 // pred_check_branch
      %58 = sbr.rel (0) target = $region57
    $region56: #{tpu_custom_call.1} parent=1 // pred_region
      %59 = dma.done [#allocation4], 8192
    $region57: #{tpu_custom_call.1} parent=1 // pred_fallthru
      _
    %v61 = vld [vmem:[%s0] sm:$0xff]
    %v62 = vld [vmem:[%s0 + $0x8] sm:$0xff]
    %v63 = vld [vmem:[%s0 + $0x10] sm:$0xff]
    %v64 = vld [vmem:[%s0 + $0x18] sm:$0xff]
    %v65 = vld [vmem:[%s0 + $0x20] sm:$0xff]
    %v66 = vld [vmem:[%s0 + $0x28] sm:$0xff]
    %v67 = vld [vmem:[%s0 + $0x30] sm:$0xff]
    %v68 = vld [vmem:[%s0 + $0x38] sm:$0xff]
    %v69 = vld [vmem:[%s0 + $0x40] sm:$0xff]
    %v70 = vld [vmem:[%s0 + $0x48] sm:$0xff]
    %v71 = vld [vmem:[%s0 + $0x50] sm:$0xff]
    %v72 = vld [vmem:[%s0 + $0x58] sm:$0xff]
    %v73 = vld [vmem:[%s0 + $0x60] sm:$0xff]
    %v74 = vld [vmem:[%s0 + $0x68] sm:$0xff]
    %v75 = vld [vmem:[%s0 + $0x70] sm:$0xff]
    %v76 = vld [vmem:[%s0 + $0x78] sm:$0xff]
    %v77 = vld [vmem:[%s0 + $0x80] sm:$0xff]
    %v78 = vld [vmem:[%s0 + $0x88] sm:$0xff]
    %v79 = vld [vmem:[%s0 + $0x90] sm:$0xff]
    %v80 = vld [vmem:[%s0 + $0x98] sm:$0xff]
    %v81 = vld [vmem:[%s0 + $0xa0] sm:$0xff]
    %v82 = vld [vmem:[%s0 + $0xa8] sm:$0xff]
    %v83 = vld [vmem:[%s0 + $0xb0] sm:$0xff]
    %v84 = vld [vmem:[%s0 + $0xb8] sm:$0xff]
    %v85 = vld [vmem:[%s0 + $0xc0] sm:$0xff]
    %v86 = vld [vmem:[%s0 + $0xc8] sm:$0xff]
    %v87 = vld [vmem:[%s0 + $0xd0] sm:$0xff]
    %v88 = vld [vmem:[%s0 + $0xd8] sm:$0xff]
    %v89 = vld [vmem:[%s0 + $0xe0] sm:$0xff]
    %v90 = vld [vmem:[%s0 + $0xe8] sm:$0xff]
    %v91 = vld [vmem:[%s0 + $0xf0] sm:$0xff]
    %v92 = vld [vmem:[%s0 + $0xf8] sm:$0xff]
    %v93 = vld [vmem:[%s1] sm:$0xff]
    %v94 = vld [vmem:[%s1 + $0x8] sm:$0xff]
    %v95 = vld [vmem:[%s1 + $0x10] sm:$0xff]
    %v96 = vld [vmem:[%s1 + $0x18] sm:$0xff]
    %v97 = vld [vmem:[%s1 + $0x20] sm:$0xff]
    %v98 = vld [vmem:[%s1 + $0x28] sm:$0xff]
    %v99 = vld [vmem:[%s1 + $0x30] sm:$0xff]
    %v100 = vld [vmem:[%s1 + $0x38] sm:$0xff]
    %v101 = vld [vmem:[%s2] sm:$0xf]
    %v103 = vlaneseq
    %v104 = vshrl.u32 %v103, 7
    %v105 = vsub.s32 0, %v104
    %v106 = vrot.slane %v101, %v105
    %v107 = vlaneseq
    %v108 = vshrl.u32 %v107, 7
    %v109 = vsub.s32 1, %v108
    %v110 = vrot.slane %v101, %v109
    %v111 = vlaneseq
    %v112 = vshrl.u32 %v111, 7
    %v113 = vsub.s32 2, %v112
    %v114 = vrot.slane %v101, %v113
    %v115 = vlaneseq
    %v116 = vshrl.u32 %v115, 7
    %v117 = vsub.s32 3, %v116
    %v118 = vrot.slane %v101, %v117
    %vm123 = vcmask 130048
    %v125 = vsel %vm123, %v61, 0
    %v128 = vsel %vm123, %v62, 0
    %v131 = vsel %vm123, %v63, 0
    %v134 = vsel %vm123, %v64, 0
    %v137 = vsel %vm123, %v65, 0
    %v140 = vsel %vm123, %v66, 0
    %v143 = vsel %vm123, %v67, 0
    %v146 = vsel %vm123, %v68, 0
    %v149 = vsel %vm123, %v69, 0
    %v152 = vsel %vm123, %v70, 0
    %v155 = vsel %vm123, %v71, 0
    %v158 = vsel %vm123, %v72, 0
    %v161 = vsel %vm123, %v73, 0
    %v164 = vsel %vm123, %v74, 0
    %v167 = vsel %vm123, %v75, 0
    %v170 = vsel %vm123, %v76, 0
    %v173 = vsel %vm123, %v77, 0
    %v176 = vsel %vm123, %v78, 0
    %v179 = vsel %vm123, %v79, 0
    %v182 = vsel %vm123, %v80, 0
    %v185 = vsel %vm123, %v81, 0
    %v188 = vsel %vm123, %v82, 0
    %v191 = vsel %vm123, %v83, 0
    %v194 = vsel %vm123, %v84, 0
    %v197 = vsel %vm123, %v85, 0
    %v200 = vsel %vm123, %v86, 0
    %v203 = vsel %vm123, %v87, 0
    %v206 = vsel %vm123, %v88, 0
    %v209 = vsel %vm123, %v89, 0
    %v212 = vsel %vm123, %v90, 0
    %v215 = vsel %vm123, %v91, 0
    %v218 = vsel %vm123, %v92, 0
    %220 = vmatprep.subr.mxu0 %v94
    %221 = vmatpush1.msra.mxu0 %v93
    %222 = vmatprep.subr.mxu0 %v98
    %223 = vmatpush1.msra.mxu0 %v97
    %224 = vmatprep.subr.mxu0 0.0
    %225 = vmatpush1.msra.mxu0 0.0
    %226 = vmatprep.subr.mxu0 0.0
    %227 = vmatpush1.msra.mxu0 0.0
    %228 = vmatprep.subr.mxu0 0.0
    %229 = vmatpush1.msra.mxu0 0.0
    %230 = vmatprep.subr.mxu0 0.0
    %231 = vmatpush1.msra.mxu0 0.0
    %232 = vmatprep.subr.mxu0 0.0
    %233 = vmatpush1.msra.mxu0 0.0
    %234 = vmatprep.subr.mxu0 0.0
    %235 = vmatpush1.msra.mxu0 0.0
    %236 = vmatprep.subr.mxu0 0.0
    %237 = vmatpush1.msra.mxu0 0.0
    %238 = vmatprep.subr.mxu0 0.0
    %239 = vmatpush1.msra.mxu0 0.0
    %240 = vmatprep.subr.mxu0 0.0
    %241 = vmatpush1.msra.mxu0 0.0
    %242 = vmatprep.subr.mxu0 0.0
    %243 = vmatpush1.msra.mxu0 0.0
    %244 = vmatprep.subr.mxu0 0.0
    %245 = vmatpush1.msra.mxu0 0.0
    %246 = vmatprep.subr.mxu0 0.0
    %247 = vmatpush1.msra.mxu0 0.0
    %248 = vmatprep.subr.mxu0 0.0
    %249 = vmatpush1.msra.mxu0 0.0
    %250 = vmatprep.subr.mxu0 0.0
    %251 = vmatpush1.msra.mxu0 0.0
    %252 = vmatprep.subr.mxu0 0.0
    %253 = vmatpush1.msra.mxu0 0.0
    %254 = vmatprep.subr.mxu0 0.0
    %255 = vmatpush1.msra.mxu0 0.0
    %256 = vmatprep.subr.mxu0 0.0
    %257 = vmatpush1.msra.mxu0 0.0
    %258 = vmatprep.subr.mxu0 0.0
    %259 = vmatpush1.msra.mxu0 0.0
    %260 = vmatprep.subr.mxu0 0.0
    %261 = vmatpush1.msra.mxu0 0.0
    %262 = vmatprep.subr.mxu0 0.0
    %263 = vmatpush1.msra.mxu0 0.0
    %264 = vmatprep.subr.mxu0 0.0
    %265 = vmatpush1.msra.mxu0 0.0
    %266 = vmatprep.subr.mxu0 0.0
    %267 = vmatpush1.msra.mxu0 0.0
    %268 = vmatprep.subr.mxu0 0.0
    %269 = vmatpush1.msra.mxu0 0.0
    %270 = vmatprep.subr.mxu0 0.0
    %271 = vmatpush1.msra.mxu0 0.0
    %272 = vmatprep.subr.mxu0 0.0
    %273 = vmatpush1.msra.mxu0 0.0
    %274 = vmatprep.subr.mxu0 0.0
    %275 = vmatpush1.msra.mxu0 0.0
    %276 = vmatprep.subr.mxu0 0.0
    %277 = vmatpush1.msra.mxu0 0.0
    %278 = vmatprep.subr.mxu0 0.0
    %279 = vmatpush1.msra.mxu0 0.0
    %280 = vmatprep.subr.mxu0 0.0
    %281 = vmatpush1.msra.mxu0 0.0
    %282 = vmatprep.subr.mxu0 0.0
    %283 = vmatpush1.msra.mxu0 0.0
    %284 = vmatprep.mubr.f32.mxu0 0.0
    %285 = vmatmul.mubr.f32.gmra.mrb[0].mxu0 %v125
    %v286 = vpop.f32.mrb[0].mxu0
    %v287 = vadd.f32 %v106, %v286
    %v288 = vpop.f32.mrb[0].mxu0
    %v289 = vadd.f32 %v110, %v288
    %290 = vmatprep.mubr.f32.mxu0 0.0
    %291 = vmatmul.mubr.f32.gmra.mrb[0].mxu0 %v128
    %v292 = vpop.f32.mrb[0].mxu0
    %v293 = vadd.f32 %v106, %v292
    %v294 = vpop.f32.mrb[0].mxu0
    %v295 = vadd.f32 %v110, %v294
    %296 = vmatprep.mubr.f32.mxu0 0.0
    %297 = vmatmul.mubr.f32.gmra.mrb[0].mxu0 %v131
    %v298 = vpop.f32.mrb[0].mxu0
    %v299 = vadd.f32 %v106, %v298
    %v300 = vpop.f32.mrb[0].mxu0
    %v301 = vadd.f32 %v110, %v300
    %302 = vmatprep.mubr.f32.mxu0 0.0
    %303 = vmatmul.mubr.f32.gmra.mrb[0].mxu0 %v134
    %v304 = vpop.f32.mrb[0].mxu0
    %v305 = vadd.f32 %v106, %v304
    %v306 = vpop.f32.mrb[0].mxu0
    %v307 = vadd.f32 %v110, %v306
    %308 = vmatprep.mubr.f32.mxu0 0.0
    %309 = vmatmul.mubr.f32.gmra.mrb[0].mxu0 %v137
    %v310 = vpop.f32.mrb[0].mxu0
    %v311 = vadd.f32 %v106, %v310
    %v312 = vpop.f32.mrb[0].mxu0
    %v313 = vadd.f32 %v110, %v312
    %314 = vmatprep.mubr.f32.mxu0 0.0
    %315 = vmatmul.mubr.f32.gmra.mrb[0].mxu0 %v140
    %v316 = vpop.f32.mrb[0].mxu0
    %v317 = vadd.f32 %v106, %v316
    %v318 = vpop.f32.mrb[0].mxu0
    %v319 = vadd.f32 %v110, %v318
    %320 = vmatprep.mubr.f32.mxu0 0.0
    %321 = vmatmul.mubr.f32.gmra.mrb[0].mxu0 %v143
    %v322 = vpop.f32.mrb[0].mxu0
    %v323 = vadd.f32 %v106, %v322
    %v324 = vpop.f32.mrb[0].mxu0
    %v325 = vadd.f32 %v110, %v324
    %326 = vmatprep.mubr.f32.mxu0 0.0
    %327 = vmatmul.mubr.f32.gmra.mrb[0].mxu0 %v146
    %v328 = vpop.f32.mrb[0].mxu0
    %v329 = vadd.f32 %v106, %v328
    %v330 = vpop.f32.mrb[0].mxu0
    %v331 = vadd.f32 %v110, %v330
    %332 = vmatprep.mubr.f32.mxu0 0.0
    %333 = vmatmul.mubr.f32.gmra.mrb[0].mxu0 %v149
    %v334 = vpop.f32.mrb[0].mxu0
    %v335 = vadd.f32 %v106, %v334
    %v336 = vpop.f32.mrb[0].mxu0
    %v337 = vadd.f32 %v110, %v336
    %338 = vmatprep.mubr.f32.mxu0 0.0
    %339 = vmatmul.mubr.f32.gmra.mrb[0].mxu0 %v152
    %v340 = vpop.f32.mrb[0].mxu0
    %v341 = vadd.f32 %v106, %v340
    %v342 = vpop.f32.mrb[0].mxu0
    %v343 = vadd.f32 %v110, %v342
    %344 = vmatprep.mubr.f32.mxu0 0.0
    %345 = vmatmul.mubr.f32.gmra.mrb[0].mxu0 %v155
    %v346 = vpop.f32.mrb[0].mxu0
    %v347 = vadd.f32 %v106, %v346
    %v348 = vpop.f32.mrb[0].mxu0
    %v349 = vadd.f32 %v110, %v348
    %350 = vmatprep.mubr.f32.mxu0 0.0
    %351 = vmatmul.mubr.f32.gmra.mrb[0].mxu0 %v158
    %v352 = vpop.f32.mrb[0].mxu0
    %v353 = vadd.f32 %v106, %v352
    %v354 = vpop.f32.mrb[0].mxu0
    %v355 = vadd.f32 %v110, %v354
    %356 = vmatprep.mubr.f32.mxu0 0.0
    %357 = vmatmul.mubr.f32.gmra.mrb[0].mxu0 %v161
    %v358 = vpop.f32.mrb[0].mxu0
    %v359 = vadd.f32 %v106, %v358
    %v360 = vpop.f32.mrb[0].mxu0
    %v361 = vadd.f32 %v110, %v360
    %362 = vmatprep.mubr.f32.mxu0 0.0
    %363 = vmatmul.mubr.f32.gmra.mrb[0].mxu0 %v164
    %v364 = vpop.f32.mrb[0].mxu0
    %v365 = vadd.f32 %v106, %v364
    %v366 = vpop.f32.mrb[0].mxu0
    %v367 = vadd.f32 %v110, %v366
    %368 = vmatprep.mubr.f32.mxu0 0.0
    %369 = vmatmul.mubr.f32.gmra.mrb[0].mxu0 %v167
    %v370 = vpop.f32.mrb[0].mxu0
    %v371 = vadd.f32 %v106, %v370
    %v372 = vpop.f32.mrb[0].mxu0
    %v373 = vadd.f32 %v110, %v372
    %374 = vmatprep.mubr.f32.mxu0 0.0
    %375 = vmatmul.mubr.f32.gmra.mrb[0].mxu0 %v170
    %v376 = vpop.f32.mrb[0].mxu0
    %v377 = vadd.f32 %v106, %v376
    %v378 = vpop.f32.mrb[0].mxu0
    %v379 = vadd.f32 %v110, %v378
    %380 = vmatprep.mubr.f32.mxu0 0.0
    %381 = vmatmul.mubr.f32.gmra.mrb[0].mxu0 %v173
    %v382 = vpop.f32.mrb[0].mxu0
    %v383 = vadd.f32 %v106, %v382
    %v384 = vpop.f32.mrb[0].mxu0
    %v385 = vadd.f32 %v110, %v384
    %386 = vmatprep.mubr.f32.mxu0 0.0
    %387 = vmatmul.mubr.f32.gmra.mrb[0].mxu0 %v176
    %v388 = vpop.f32.mrb[0].mxu0
    %v389 = vadd.f32 %v106, %v388
    %v390 = vpop.f32.mrb[0].mxu0
    %v391 = vadd.f32 %v110, %v390
    %392 = vmatprep.mubr.f32.mxu0 0.0
    %393 = vmatmul.mubr.f32.gmra.mrb[0].mxu0 %v179
    %v394 = vpop.f32.mrb[0].mxu0
    %v395 = vadd.f32 %v106, %v394
    %v396 = vpop.f32.mrb[0].mxu0
    %v397 = vadd.f32 %v110, %v396
    %398 = vmatprep.mubr.f32.mxu0 0.0
    %399 = vmatmul.mubr.f32.gmra.mrb[0].mxu0 %v182
    %v400 = vpop.f32.mrb[0].mxu0
    %v401 = vadd.f32 %v106, %v400
    %v402 = vpop.f32.mrb[0].mxu0
    %v403 = vadd.f32 %v110, %v402
    %404 = vmatprep.mubr.f32.mxu0 0.0
    %405 = vmatmul.mubr.f32.gmra.mrb[0].mxu0 %v185
    %v406 = vpop.f32.mrb[0].mxu0
    %v407 = vadd.f32 %v106, %v406
    %v408 = vpop.f32.mrb[0].mxu0
    %v409 = vadd.f32 %v110, %v408
    %410 = vmatprep.mubr.f32.mxu0 0.0
    %411 = vmatmul.mubr.f32.gmra.mrb[0].mxu0 %v188
    %v412 = vpop.f32.mrb[0].mxu0
    %v413 = vadd.f32 %v106, %v412
    %v414 = vpop.f32.mrb[0].mxu0
    %v415 = vadd.f32 %v110, %v414
    %416 = vmatprep.mubr.f32.mxu0 0.0
    %417 = vmatmul.mubr.f32.gmra.mrb[0].mxu0 %v191
    %v418 = vpop.f32.mrb[0].mxu0
    %v419 = vadd.f32 %v106, %v418
    %v420 = vpop.f32.mrb[0].mxu0
    %v421 = vadd.f32 %v110, %v420
    %422 = vmatprep.mubr.f32.mxu0 0.0
    %423 = vmatmul.mubr.f32.gmra.mrb[0].mxu0 %v194
    %v424 = vpop.f32.mrb[0].mxu0
    %v425 = vadd.f32 %v106, %v424
    %v426 = vpop.f32.mrb[0].mxu0
    %v427 = vadd.f32 %v110, %v426
    %428 = vmatprep.mubr.f32.mxu0 0.0
    %429 = vmatmul.mubr.f32.gmra.mrb[0].mxu0 %v197
    %v430 = vpop.f32.mrb[0].mxu0
    %v431 = vadd.f32 %v106, %v430
    %v432 = vpop.f32.mrb[0].mxu0
    %v433 = vadd.f32 %v110, %v432
    %434 = vmatprep.mubr.f32.mxu0 0.0
    %435 = vmatmul.mubr.f32.gmra.mrb[0].mxu0 %v200
    %v436 = vpop.f32.mrb[0].mxu0
    %v437 = vadd.f32 %v106, %v436
    %v438 = vpop.f32.mrb[0].mxu0
    %v439 = vadd.f32 %v110, %v438
    %440 = vmatprep.mubr.f32.mxu0 0.0
    %441 = vmatmul.mubr.f32.gmra.mrb[0].mxu0 %v203
    %v442 = vpop.f32.mrb[0].mxu0
    %v443 = vadd.f32 %v106, %v442
    %v444 = vpop.f32.mrb[0].mxu0
    %v445 = vadd.f32 %v110, %v444
    %446 = vmatprep.mubr.f32.mxu0 0.0
    %447 = vmatmul.mubr.f32.gmra.mrb[0].mxu0 %v206
    %v448 = vpop.f32.mrb[0].mxu0
    %v449 = vadd.f32 %v106, %v448
    %v450 = vpop.f32.mrb[0].mxu0
    %v451 = vadd.f32 %v110, %v450
    %452 = vmatprep.mubr.f32.mxu0 0.0
    %453 = vmatmul.mubr.f32.gmra.mrb[0].mxu0 %v209
    %v454 = vpop.f32.mrb[0].mxu0
    %v455 = vadd.f32 %v106, %v454
    %v456 = vpop.f32.mrb[0].mxu0
    %v457 = vadd.f32 %v110, %v456
    %458 = vmatprep.mubr.f32.mxu0 0.0
    %459 = vmatmul.mubr.f32.gmra.mrb[0].mxu0 %v212
    %v460 = vpop.f32.mrb[0].mxu0
    %v461 = vadd.f32 %v106, %v460
    %v462 = vpop.f32.mrb[0].mxu0
    %v463 = vadd.f32 %v110, %v462
    %464 = vmatprep.mubr.f32.mxu0 0.0
    %465 = vmatmul.mubr.f32.gmra.mrb[0].mxu0 %v215
    %v466 = vpop.f32.mrb[0].mxu0
    %v467 = vadd.f32 %v106, %v466
    %v468 = vpop.f32.mrb[0].mxu0
    %v469 = vadd.f32 %v110, %v468
    %470 = vmatprep.mubr.f32.mxu0 0.0
    %471 = vmatmul.mubr.f32.gmra.mrb[0].mxu0 %v218
    %v472 = vpop.f32.mrb[0].mxu0
    %v473 = vadd.f32 %v106, %v472
    %v474 = vpop.f32.mrb[0].mxu0
    %v475 = vadd.f32 %v110, %v474
    %476 = vdwg.mxu0
    %477 = vmatprep.subr.mxu0 %v96
    %478 = vmatpush1.msra.mxu0 %v95
    %479 = vmatprep.subr.mxu0 %v100
    %480 = vmatpush1.msra.mxu0 %v99
    %481 = vmatprep.subr.mxu0 0.0
    %482 = vmatpush1.msra.mxu0 0.0
    %483 = vmatprep.subr.mxu0 0.0
    %484 = vmatpush1.msra.mxu0 0.0
    %485 = vmatprep.subr.mxu0 0.0
    %486 = vmatpush1.msra.mxu0 0.0
    %487 = vmatprep.subr.mxu0 0.0
    %488 = vmatpush1.msra.mxu0 0.0
    %489 = vmatprep.subr.mxu0 0.0
    %490 = vmatpush1.msra.mxu0 0.0
    %491 = vmatprep.subr.mxu0 0.0
    %492 = vmatpush1.msra.mxu0 0.0
    %493 = vmatprep.subr.mxu0 0.0
    %494 = vmatpush1.msra.mxu0 0.0
    %495 = vmatprep.subr.mxu0 0.0
    %496 = vmatpush1.msra.mxu0 0.0
    %497 = vmatprep.subr.mxu0 0.0
    %498 = vmatpush1.msra.mxu0 0.0
    %499 = vmatprep.subr.mxu0 0.0
    %500 = vmatpush1.msra.mxu0 0.0
    %501 = vmatprep.subr.mxu0 0.0
    %502 = vmatpush1.msra.mxu0 0.0
    %503 = vmatprep.subr.mxu0 0.0
    %504 = vmatpush1.msra.mxu0 0.0
    %505 = vmatprep.subr.mxu0 0.0
    %506 = vmatpush1.msra.mxu0 0.0
    %507 = vmatprep.subr.mxu0 0.0
    %508 = vmatpush1.msra.mxu0 0.0
    %509 = vmatprep.subr.mxu0 0.0
    %510 = vmatpush1.msra.mxu0 0.0
    %511 = vmatprep.subr.mxu0 0.0
    %512 = vmatpush1.msra.mxu0 0.0
    %513 = vmatprep.subr.mxu0 0.0
    %514 = vmatpush1.msra.mxu0 0.0
    %515 = vmatprep.subr.mxu0 0.0
    %516 = vmatpush1.msra.mxu0 0.0
    %517 = vmatprep.subr.mxu0 0.0
    %518 = vmatpush1.msra.mxu0 0.0
    %519 = vmatprep.subr.mxu0 0.0
    %520 = vmatpush1.msra.mxu0 0.0
    %521 = vmatprep.subr.mxu0 0.0
    %522 = vmatpush1.msra.mxu0 0.0
    %523 = vmatprep.subr.mxu0 0.0
    %524 = vmatpush1.msra.mxu0 0.0
    %525 = vmatprep.subr.mxu0 0.0
    %526 = vmatpush1.msra.mxu0 0.0
    %527 = vmatprep.subr.mxu0 0.0
    %528 = vmatpush1.msra.mxu0 0.0
    %529 = vmatprep.subr.mxu0 0.0
    %530 = vmatpush1.msra.mxu0 0.0
    %531 = vmatprep.subr.mxu0 0.0
    %532 = vmatpush1.msra.mxu0 0.0
    %533 = vmatprep.subr.mxu0 0.0
    %534 = vmatpush1.msra.mxu0 0.0
    %535 = vmatprep.subr.mxu0 0.0
    %536 = vmatpush1.msra.mxu0 0.0
    %537 = vmatprep.subr.mxu0 0.0
    %538 = vmatpush1.msra.mxu0 0.0
    %539 = vmatprep.subr.mxu0 0.0
    %540 = vmatpush1.msra.mxu0 0.0
    %541 = vmatprep.mubr.f32.mxu0 0.0
    %542 = vmatmul.mubr.f32.gmra.mrb[0].mxu0 %v125
    %v543 = vpop.f32.mrb[0].mxu0
    %v544 = vadd.f32 %v114, %v543
    %v545 = vpop.f32.mrb[0].mxu0
    %v546 = vadd.f32 %v118, %v545
    %547 = vmatprep.mubr.f32.mxu0 0.0
    %548 = vmatmul.mubr.f32.gmra.mrb[0].mxu0 %v128
    %v549 = vpop.f32.mrb[0].mxu0
    %v550 = vadd.f32 %v114, %v549
    %v551 = vpop.f32.mrb[0].mxu0
    %v552 = vadd.f32 %v118, %v551
    %553 = vmatprep.mubr.f32.mxu0 0.0
    %554 = vmatmul.mubr.f32.gmra.mrb[0].mxu0 %v131
    %v555 = vpop.f32.mrb[0].mxu0
    %v556 = vadd.f32 %v114, %v555
    %v557 = vpop.f32.mrb[0].mxu0
    %v558 = vadd.f32 %v118, %v557
    %559 = vmatprep.mubr.f32.mxu0 0.0
    %560 = vmatmul.mubr.f32.gmra.mrb[0].mxu0 %v134
    %v561 = vpop.f32.mrb[0].mxu0
    %v562 = vadd.f32 %v114, %v561
    %v563 = vpop.f32.mrb[0].mxu0
    %v564 = vadd.f32 %v118, %v563
    %565 = vmatprep.mubr.f32.mxu0 0.0
    %566 = vmatmul.mubr.f32.gmra.mrb[0].mxu0 %v137
    %v567 = vpop.f32.mrb[0].mxu0
    %v568 = vadd.f32 %v114, %v567
    %v569 = vpop.f32.mrb[0].mxu0
    %v570 = vadd.f32 %v118, %v569
    %571 = vmatprep.mubr.f32.mxu0 0.0
    %572 = vmatmul.mubr.f32.gmra.mrb[0].mxu0 %v140
    %v573 = vpop.f32.mrb[0].mxu0
    %v574 = vadd.f32 %v114, %v573
    %v575 = vpop.f32.mrb[0].mxu0
    %v576 = vadd.f32 %v118, %v575
    %577 = vmatprep.mubr.f32.mxu0 0.0
    %578 = vmatmul.mubr.f32.gmra.mrb[0].mxu0 %v143
    %v579 = vpop.f32.mrb[0].mxu0
    %v580 = vadd.f32 %v114, %v579
    %v581 = vpop.f32.mrb[0].mxu0
    %v582 = vadd.f32 %v118, %v581
    %583 = vmatprep.mubr.f32.mxu0 0.0
    %584 = vmatmul.mubr.f32.gmra.mrb[0].mxu0 %v146
    %v585 = vpop.f32.mrb[0].mxu0
    %v586 = vadd.f32 %v114, %v585
    %v587 = vpop.f32.mrb[0].mxu0
    %v588 = vadd.f32 %v118, %v587
    %589 = vmatprep.mubr.f32.mxu0 0.0
    %590 = vmatmul.mubr.f32.gmra.mrb[0].mxu0 %v149
    %v591 = vpop.f32.mrb[0].mxu0
    %v592 = vadd.f32 %v114, %v591
    %v593 = vpop.f32.mrb[0].mxu0
    %v594 = vadd.f32 %v118, %v593
    %595 = vmatprep.mubr.f32.mxu0 0.0
    %596 = vmatmul.mubr.f32.gmra.mrb[0].mxu0 %v152
    %v597 = vpop.f32.mrb[0].mxu0
    %v598 = vadd.f32 %v114, %v597
    %v599 = vpop.f32.mrb[0].mxu0
    %v600 = vadd.f32 %v118, %v599
    %601 = vmatprep.mubr.f32.mxu0 0.0
    %602 = vmatmul.mubr.f32.gmra.mrb[0].mxu0 %v155
    %v603 = vpop.f32.mrb[0].mxu0
    %v604 = vadd.f32 %v114, %v603
    %v605 = vpop.f32.mrb[0].mxu0
    %v606 = vadd.f32 %v118, %v605
    %607 = vmatprep.mubr.f32.mxu0 0.0
    %608 = vmatmul.mubr.f32.gmra.mrb[0].mxu0 %v158
    %v609 = vpop.f32.mrb[0].mxu0
    %v610 = vadd.f32 %v114, %v609
    %v611 = vpop.f32.mrb[0].mxu0
    %v612 = vadd.f32 %v118, %v611
    %613 = vmatprep.mubr.f32.mxu0 0.0
    %614 = vmatmul.mubr.f32.gmra.mrb[0].mxu0 %v161
    %v615 = vpop.f32.mrb[0].mxu0
    %v616 = vadd.f32 %v114, %v615
    %v617 = vpop.f32.mrb[0].mxu0
    %v618 = vadd.f32 %v118, %v617
    %619 = vmatprep.mubr.f32.mxu0 0.0
    %620 = vmatmul.mubr.f32.gmra.mrb[0].mxu0 %v164
    %v621 = vpop.f32.mrb[0].mxu0
    %v622 = vadd.f32 %v114, %v621
    %v623 = vpop.f32.mrb[0].mxu0
    %v624 = vadd.f32 %v118, %v623
    %625 = vmatprep.mubr.f32.mxu0 0.0
    %626 = vmatmul.mubr.f32.gmra.mrb[0].mxu0 %v167
    %v627 = vpop.f32.mrb[0].mxu0
    %v628 = vadd.f32 %v114, %v627
    %v629 = vpop.f32.mrb[0].mxu0
    %v630 = vadd.f32 %v118, %v629
    %631 = vmatprep.mubr.f32.mxu0 0.0
    %632 = vmatmul.mubr.f32.gmra.mrb[0].mxu0 %v170
    %v633 = vpop.f32.mrb[0].mxu0
    %v634 = vadd.f32 %v114, %v633
    %v635 = vpop.f32.mrb[0].mxu0
    %v636 = vadd.f32 %v118, %v635
    %637 = vmatprep.mubr.f32.mxu0 0.0
    %638 = vmatmul.mubr.f32.gmra.mrb[0].mxu0 %v173
    %v639 = vpop.f32.mrb[0].mxu0
    %v640 = vadd.f32 %v114, %v639
    %v641 = vpop.f32.mrb[0].mxu0
    %v642 = vadd.f32 %v118, %v641
    %643 = vmatprep.mubr.f32.mxu0 0.0
    %644 = vmatmul.mubr.f32.gmra.mrb[0].mxu0 %v176
    %v645 = vpop.f32.mrb[0].mxu0
    %v646 = vadd.f32 %v114, %v645
    %v647 = vpop.f32.mrb[0].mxu0
    %v648 = vadd.f32 %v118, %v647
    %649 = vmatprep.mubr.f32.mxu0 0.0
    %650 = vmatmul.mubr.f32.gmra.mrb[0].mxu0 %v179
    %v651 = vpop.f32.mrb[0].mxu0
    %v652 = vadd.f32 %v114, %v651
    %v653 = vpop.f32.mrb[0].mxu0
    %v654 = vadd.f32 %v118, %v653
    %655 = vmatprep.mubr.f32.mxu0 0.0
    %656 = vmatmul.mubr.f32.gmra.mrb[0].mxu0 %v182
    %v657 = vpop.f32.mrb[0].mxu0
    %v658 = vadd.f32 %v114, %v657
    %v659 = vpop.f32.mrb[0].mxu0
    %v660 = vadd.f32 %v118, %v659
    %661 = vmatprep.mubr.f32.mxu0 0.0
    %662 = vmatmul.mubr.f32.gmra.mrb[0].mxu0 %v185
    %v663 = vpop.f32.mrb[0].mxu0
    %v664 = vadd.f32 %v114, %v663
    %v665 = vpop.f32.mrb[0].mxu0
    %v666 = vadd.f32 %v118, %v665
    %667 = vmatprep.mubr.f32.mxu0 0.0
    %668 = vmatmul.mubr.f32.gmra.mrb[0].mxu0 %v188
    %v669 = vpop.f32.mrb[0].mxu0
    %v670 = vadd.f32 %v114, %v669
    %v671 = vpop.f32.mrb[0].mxu0
    %v672 = vadd.f32 %v118, %v671
    %673 = vmatprep.mubr.f32.mxu0 0.0
    %674 = vmatmul.mubr.f32.gmra.mrb[0].mxu0 %v191
    %v675 = vpop.f32.mrb[0].mxu0
    %v676 = vadd.f32 %v114, %v675
    %v677 = vpop.f32.mrb[0].mxu0
    %v678 = vadd.f32 %v118, %v677
    %679 = vmatprep.mubr.f32.mxu0 0.0
    %680 = vmatmul.mubr.f32.gmra.mrb[0].mxu0 %v194
    %v681 = vpop.f32.mrb[0].mxu0
    %v682 = vadd.f32 %v114, %v681
    %v683 = vpop.f32.mrb[0].mxu0
    %v684 = vadd.f32 %v118, %v683
    %685 = vmatprep.mubr.f32.mxu0 0.0
    %686 = vmatmul.mubr.f32.gmra.mrb[0].mxu0 %v197
    %v687 = vpop.f32.mrb[0].mxu0
    %v688 = vadd.f32 %v114, %v687
    %v689 = vpop.f32.mrb[0].mxu0
    %v690 = vadd.f32 %v118, %v689
    %691 = vmatprep.mubr.f32.mxu0 0.0
    %692 = vmatmul.mubr.f32.gmra.mrb[0].mxu0 %v200
    %v693 = vpop.f32.mrb[0].mxu0
    %v694 = vadd.f32 %v114, %v693
    %v695 = vpop.f32.mrb[0].mxu0
    %v696 = vadd.f32 %v118, %v695
    %697 = vmatprep.mubr.f32.mxu0 0.0
    %698 = vmatmul.mubr.f32.gmra.mrb[0].mxu0 %v203
    %v699 = vpop.f32.mrb[0].mxu0
    %v700 = vadd.f32 %v114, %v699
    %v701 = vpop.f32.mrb[0].mxu0
    %v702 = vadd.f32 %v118, %v701
    %703 = vmatprep.mubr.f32.mxu0 0.0
    %704 = vmatmul.mubr.f32.gmra.mrb[0].mxu0 %v206
    %v705 = vpop.f32.mrb[0].mxu0
    %v706 = vadd.f32 %v114, %v705
    %v707 = vpop.f32.mrb[0].mxu0
    %v708 = vadd.f32 %v118, %v707
    %709 = vmatprep.mubr.f32.mxu0 0.0
    %710 = vmatmul.mubr.f32.gmra.mrb[0].mxu0 %v209
    %v711 = vpop.f32.mrb[0].mxu0
    %v712 = vadd.f32 %v114, %v711
    %v713 = vpop.f32.mrb[0].mxu0
    %v714 = vadd.f32 %v118, %v713
    %715 = vmatprep.mubr.f32.mxu0 0.0
    %716 = vmatmul.mubr.f32.gmra.mrb[0].mxu0 %v212
    %v717 = vpop.f32.mrb[0].mxu0
    %v718 = vadd.f32 %v114, %v717
    %v719 = vpop.f32.mrb[0].mxu0
    %v720 = vadd.f32 %v118, %v719
    %721 = vmatprep.mubr.f32.mxu0 0.0
    %722 = vmatmul.mubr.f32.gmra.mrb[0].mxu0 %v215
    %v723 = vpop.f32.mrb[0].mxu0
    %v724 = vadd.f32 %v114, %v723
    %v725 = vpop.f32.mrb[0].mxu0
    %v726 = vadd.f32 %v118, %v725
    %727 = vmatprep.mubr.f32.mxu0 0.0
    %728 = vmatmul.mubr.f32.gmra.mrb[0].mxu0 %v218
    %v729 = vpop.f32.mrb[0].mxu0
    %v730 = vadd.f32 %v114, %v729
    %v731 = vpop.f32.mrb[0].mxu0
    %v732 = vadd.f32 %v118, %v731
    %733 = vdwg.mxu0
    %v734 = vmax.f32 %v287, 0.0
    %v735 = vmax.f32 %v289, 0.0
    %v736 = vmax.f32 %v544, 0.0
    %v737 = vmax.f32 %v546, 0.0
    %v738 = vmax.f32 %v293, 0.0
    %v739 = vmax.f32 %v295, 0.0
    %v740 = vmax.f32 %v550, 0.0
    %v741 = vmax.f32 %v552, 0.0
    %v742 = vmax.f32 %v299, 0.0
    %v743 = vmax.f32 %v301, 0.0
    %v744 = vmax.f32 %v556, 0.0
    %v745 = vmax.f32 %v558, 0.0
    %v746 = vmax.f32 %v305, 0.0
    %v747 = vmax.f32 %v307, 0.0
    %v748 = vmax.f32 %v562, 0.0
    %v749 = vmax.f32 %v564, 0.0
    %v750 = vmax.f32 %v311, 0.0
    %v751 = vmax.f32 %v313, 0.0
    %v752 = vmax.f32 %v568, 0.0
    %v753 = vmax.f32 %v570, 0.0
    %v754 = vmax.f32 %v317, 0.0
    %v755 = vmax.f32 %v319, 0.0
    %v756 = vmax.f32 %v574, 0.0
    %v757 = vmax.f32 %v576, 0.0
    %v758 = vmax.f32 %v323, 0.0
    %v759 = vmax.f32 %v325, 0.0
    %v760 = vmax.f32 %v580, 0.0
    %v761 = vmax.f32 %v582, 0.0
    %v762 = vmax.f32 %v329, 0.0
    %v763 = vmax.f32 %v331, 0.0
    %v764 = vmax.f32 %v586, 0.0
    %v765 = vmax.f32 %v588, 0.0
    %v766 = vmax.f32 %v335, 0.0
    %v767 = vmax.f32 %v337, 0.0
    %v768 = vmax.f32 %v592, 0.0
    %v769 = vmax.f32 %v594, 0.0
    %v770 = vmax.f32 %v341, 0.0
    %v771 = vmax.f32 %v343, 0.0
    %v772 = vmax.f32 %v598, 0.0
    %v773 = vmax.f32 %v600, 0.0
    %v774 = vmax.f32 %v347, 0.0
    %v775 = vmax.f32 %v349, 0.0
    %v776 = vmax.f32 %v604, 0.0
    %v777 = vmax.f32 %v606, 0.0
    %v778 = vmax.f32 %v353, 0.0
    %v779 = vmax.f32 %v355, 0.0
    %v780 = vmax.f32 %v610, 0.0
    %v781 = vmax.f32 %v612, 0.0
    %v782 = vmax.f32 %v359, 0.0
    %v783 = vmax.f32 %v361, 0.0
    %v784 = vmax.f32 %v616, 0.0
    %v785 = vmax.f32 %v618, 0.0
    %v786 = vmax.f32 %v365, 0.0
    %v787 = vmax.f32 %v367, 0.0
    %v788 = vmax.f32 %v622, 0.0
    %v789 = vmax.f32 %v624, 0.0
    %v790 = vmax.f32 %v371, 0.0
    %v791 = vmax.f32 %v373, 0.0
    %v792 = vmax.f32 %v628, 0.0
    %v793 = vmax.f32 %v630, 0.0
    %v794 = vmax.f32 %v377, 0.0
    %v795 = vmax.f32 %v379, 0.0
    %v796 = vmax.f32 %v634, 0.0
    %v797 = vmax.f32 %v636, 0.0
    %v798 = vmax.f32 %v383, 0.0
    %v799 = vmax.f32 %v385, 0.0
    %v800 = vmax.f32 %v640, 0.0
    %v801 = vmax.f32 %v642, 0.0
    %v802 = vmax.f32 %v389, 0.0
    %v803 = vmax.f32 %v391, 0.0
    %v804 = vmax.f32 %v646, 0.0
    %v805 = vmax.f32 %v648, 0.0
    %v806 = vmax.f32 %v395, 0.0
    %v807 = vmax.f32 %v397, 0.0
    %v808 = vmax.f32 %v652, 0.0
    %v809 = vmax.f32 %v654, 0.0
    %v810 = vmax.f32 %v401, 0.0
    %v811 = vmax.f32 %v403, 0.0
    %v812 = vmax.f32 %v658, 0.0
    %v813 = vmax.f32 %v660, 0.0
    %v814 = vmax.f32 %v407, 0.0
    %v815 = vmax.f32 %v409, 0.0
    %v816 = vmax.f32 %v664, 0.0
    %v817 = vmax.f32 %v666, 0.0
    %v818 = vmax.f32 %v413, 0.0
    %v819 = vmax.f32 %v415, 0.0
    %v820 = vmax.f32 %v670, 0.0
    %v821 = vmax.f32 %v672, 0.0
    %v822 = vmax.f32 %v419, 0.0
    %v823 = vmax.f32 %v421, 0.0
    %v824 = vmax.f32 %v676, 0.0
    %v825 = vmax.f32 %v678, 0.0
    %v826 = vmax.f32 %v425, 0.0
    %v827 = vmax.f32 %v427, 0.0
    %v828 = vmax.f32 %v682, 0.0
    %v829 = vmax.f32 %v684, 0.0
    %v830 = vmax.f32 %v431, 0.0
    %v831 = vmax.f32 %v433, 0.0
    %v832 = vmax.f32 %v688, 0.0
    %v833 = vmax.f32 %v690, 0.0
    %v834 = vmax.f32 %v437, 0.0
    %v835 = vmax.f32 %v439, 0.0
    %v836 = vmax.f32 %v694, 0.0
    %v837 = vmax.f32 %v696, 0.0
    %v838 = vmax.f32 %v443, 0.0
    %v839 = vmax.f32 %v445, 0.0
    %v840 = vmax.f32 %v700, 0.0
    %v841 = vmax.f32 %v702, 0.0
    %v842 = vmax.f32 %v449, 0.0
    %v843 = vmax.f32 %v451, 0.0
    %v844 = vmax.f32 %v706, 0.0
    %v845 = vmax.f32 %v708, 0.0
    %v846 = vmax.f32 %v455, 0.0
    %v847 = vmax.f32 %v457, 0.0
    %v848 = vmax.f32 %v712, 0.0
    %v849 = vmax.f32 %v714, 0.0
    %v850 = vmax.f32 %v461, 0.0
    %v851 = vmax.f32 %v463, 0.0
    %v852 = vmax.f32 %v718, 0.0
    %v853 = vmax.f32 %v720, 0.0
    %v854 = vmax.f32 %v467, 0.0
    %v855 = vmax.f32 %v469, 0.0
    %v856 = vmax.f32 %v724, 0.0
    %v857 = vmax.f32 %v726, 0.0
    %v858 = vmax.f32 %v473, 0.0
    %v859 = vmax.f32 %v475, 0.0
    %v860 = vmax.f32 %v730, 0.0
    %v861 = vmax.f32 %v732, 0.0
    %v862 = vpack.c.bf16 %v738, %v734
    %v863 = vpack.c.bf16 %v739, %v735
    %v864 = vpack.c.bf16 %v740, %v736
    %v865 = vpack.c.bf16 %v741, %v737
    %v866 = vpack.c.bf16 %v746, %v742
    %v867 = vpack.c.bf16 %v747, %v743
    %v868 = vpack.c.bf16 %v748, %v744
    %v869 = vpack.c.bf16 %v749, %v745
    %v870 = vpack.c.bf16 %v754, %v750
    %v871 = vpack.c.bf16 %v755, %v751
    %v872 = vpack.c.bf16 %v756, %v752
    %v873 = vpack.c.bf16 %v757, %v753
    %v874 = vpack.c.bf16 %v762, %v758
    %v875 = vpack.c.bf16 %v763, %v759
    %v876 = vpack.c.bf16 %v764, %v760
    %v877 = vpack.c.bf16 %v765, %v761
    %v878 = vpack.c.bf16 %v770, %v766
    %v879 = vpack.c.bf16 %v771, %v767
    %v880 = vpack.c.bf16 %v772, %v768
    %v881 = vpack.c.bf16 %v773, %v769
    %v882 = vpack.c.bf16 %v778, %v774
    %v883 = vpack.c.bf16 %v779, %v775
    %v884 = vpack.c.bf16 %v780, %v776
    %v885 = vpack.c.bf16 %v781, %v777
    %v886 = vpack.c.bf16 %v786, %v782
    %v887 = vpack.c.bf16 %v787, %v783
    %v888 = vpack.c.bf16 %v788, %v784
    %v889 = vpack.c.bf16 %v789, %v785
    %v890 = vpack.c.bf16 %v794, %v790
    %v891 = vpack.c.bf16 %v795, %v791
    %v892 = vpack.c.bf16 %v796, %v792
    %v893 = vpack.c.bf16 %v797, %v793
    %v894 = vpack.c.bf16 %v802, %v798
    %v895 = vpack.c.bf16 %v803, %v799
    %v896 = vpack.c.bf16 %v804, %v800
    %v897 = vpack.c.bf16 %v805, %v801
    %v898 = vpack.c.bf16 %v810, %v806
    %v899 = vpack.c.bf16 %v811, %v807
    %v900 = vpack.c.bf16 %v812, %v808
    %v901 = vpack.c.bf16 %v813, %v809
    %v902 = vpack.c.bf16 %v818, %v814
    %v903 = vpack.c.bf16 %v819, %v815
    %v904 = vpack.c.bf16 %v820, %v816
    %v905 = vpack.c.bf16 %v821, %v817
    %v906 = vpack.c.bf16 %v826, %v822
    %v907 = vpack.c.bf16 %v827, %v823
    %v908 = vpack.c.bf16 %v828, %v824
    %v909 = vpack.c.bf16 %v829, %v825
    %v910 = vpack.c.bf16 %v834, %v830
    %v911 = vpack.c.bf16 %v835, %v831
    %v912 = vpack.c.bf16 %v836, %v832
    %v913 = vpack.c.bf16 %v837, %v833
    %v914 = vpack.c.bf16 %v842, %v838
    %v915 = vpack.c.bf16 %v843, %v839
    %v916 = vpack.c.bf16 %v844, %v840
    %v917 = vpack.c.bf16 %v845, %v841
    %v918 = vpack.c.bf16 %v850, %v846
    %v919 = vpack.c.bf16 %v851, %v847
    %v920 = vpack.c.bf16 %v852, %v848
    %v921 = vpack.c.bf16 %v853, %v849
    %v922 = vpack.c.bf16 %v858, %v854
    %v923 = vpack.c.bf16 %v859, %v855
    %v924 = vpack.c.bf16 %v860, %v856
    %v925 = vpack.c.bf16 %v861, %v857
    %v926 = vld [vmem:[#allocation3] sm:$0xff]
    %v927 = vld [vmem:[#allocation3 + $0x8] sm:$0xff]
    %v928 = vld [vmem:[#allocation3 + $0x10] sm:$0xff]
    %v929 = vld [vmem:[#allocation3 + $0x18] sm:$0xff]
    %v930 = vld [vmem:[#allocation3 + $0x20] sm:$0xff]
    %v931 = vld [vmem:[#allocation3 + $0x28] sm:$0xff]
    %v932 = vld [vmem:[#allocation3 + $0x30] sm:$0xff]
    %v933 = vld [vmem:[#allocation3 + $0x38] sm:$0xff]
    %v934 = vld [vmem:[#allocation3 + $0x40] sm:$0xff]
    %v935 = vld [vmem:[#allocation3 + $0x48] sm:$0xff]
    %v936 = vld [vmem:[#allocation3 + $0x50] sm:$0xff]
    %v937 = vld [vmem:[#allocation3 + $0x58] sm:$0xff]
    %v938 = vld [vmem:[#allocation3 + $0x60] sm:$0xff]
    %v939 = vld [vmem:[#allocation3 + $0x68] sm:$0xff]
    %v940 = vld [vmem:[#allocation3 + $0x70] sm:$0xff]
    %v941 = vld [vmem:[#allocation3 + $0x78] sm:$0xff]
    %v942 = vld [vmem:[#allocation3 + $0x80] sm:$0xff]
    %v943 = vld [vmem:[#allocation3 + $0x88] sm:$0xff]
    %v944 = vld [vmem:[#allocation3 + $0x90] sm:$0xff]
    %v945 = vld [vmem:[#allocation3 + $0x98] sm:$0xff]
    %v946 = vld [vmem:[#allocation3 + $0xa0] sm:$0xff]
    %v947 = vld [vmem:[#allocation3 + $0xa8] sm:$0xff]
    %v948 = vld [vmem:[#allocation3 + $0xb0] sm:$0xff]
    %v949 = vld [vmem:[#allocation3 + $0xb8] sm:$0xff]
    %v950 = vld [vmem:[#allocation3 + $0xc0] sm:$0xff]
    %v951 = vld [vmem:[#allocation3 + $0xc8] sm:$0xff]
    %v952 = vld [vmem:[#allocation3 + $0xd0] sm:$0xff]
    %v953 = vld [vmem:[#allocation3 + $0xd8] sm:$0xff]
    %v954 = vld [vmem:[#allocation3 + $0xe0] sm:$0xff]
    %v955 = vld [vmem:[#allocation3 + $0xe8] sm:$0xff]
    %v956 = vld [vmem:[#allocation3 + $0xf0] sm:$0xff]
    %v957 = vld [vmem:[#allocation3 + $0xf8] sm:$0xff]
    %v958 = vld [vmem:[#allocation3 + $0x100] sm:$0xff]
    %v959 = vld [vmem:[#allocation3 + $0x108] sm:$0xff]
    %v960 = vld [vmem:[#allocation3 + $0x110] sm:$0xff]
    %v961 = vld [vmem:[#allocation3 + $0x118] sm:$0xff]
    %v962 = vld [vmem:[#allocation3 + $0x120] sm:$0xff]
    %v963 = vld [vmem:[#allocation3 + $0x128] sm:$0xff]
    %v964 = vld [vmem:[#allocation3 + $0x130] sm:$0xff]
    %v965 = vld [vmem:[#allocation3 + $0x138] sm:$0xff]
    %v966 = vld [vmem:[#allocation3 + $0x140] sm:$0xff]
    %v967 = vld [vmem:[#allocation3 + $0x148] sm:$0xff]
    %v968 = vld [vmem:[#allocation3 + $0x150] sm:$0xff]
    %v969 = vld [vmem:[#allocation3 + $0x158] sm:$0xff]
    %v970 = vld [vmem:[#allocation3 + $0x160] sm:$0xff]
    %v971 = vld [vmem:[#allocation3 + $0x168] sm:$0xff]
    %v972 = vld [vmem:[#allocation3 + $0x170] sm:$0xff]
    %v973 = vld [vmem:[#allocation3 + $0x178] sm:$0xff]
    %v974 = vld [vmem:[#allocation3 + $0x180] sm:$0xff]
    %v975 = vld [vmem:[#allocation3 + $0x188] sm:$0xff]
    %v976 = vld [vmem:[#allocation3 + $0x190] sm:$0xff]
    %v977 = vld [vmem:[#allocation3 + $0x198] sm:$0xff]
    %v978 = vld [vmem:[#allocation3 + $0x1a0] sm:$0xff]
    %v979 = vld [vmem:[#allocation3 + $0x1a8] sm:$0xff]
    %v980 = vld [vmem:[#allocation3 + $0x1b0] sm:$0xff]
    %v981 = vld [vmem:[#allocation3 + $0x1b8] sm:$0xff]
    %v982 = vld [vmem:[#allocation3 + $0x1c0] sm:$0xff]
    %v983 = vld [vmem:[#allocation3 + $0x1c8] sm:$0xff]
    %v984 = vld [vmem:[#allocation3 + $0x1d0] sm:$0xff]
    %v985 = vld [vmem:[#allocation3 + $0x1d8] sm:$0xff]
    %v986 = vld [vmem:[#allocation3 + $0x1e0] sm:$0xff]
    %v987 = vld [vmem:[#allocation3 + $0x1e8] sm:$0xff]
    %v988 = vld [vmem:[#allocation3 + $0x1f0] sm:$0xff]
    %v989 = vld [vmem:[#allocation3 + $0x1f8] sm:$0xff]
    %v990 = vld [vmem:[%s4] sm:$0x3]
    %v992 = vlaneseq
    %v993 = vshrl.u32 %v992, 7
    %v994 = vsub.s32 0, %v993
    %v995 = vrot.slane %v990, %v994
    %v996 = vlaneseq
    %v997 = vshrl.u32 %v996, 7
    %v998 = vsub.s32 1, %v997
    %v999 = vrot.slane %v990, %v998
    %v1066 = vunpack.c.l.b16 %v926
    %v1067 = vunpack.c.h.b16 %v926
    %v1068 = vunpack.c.l.b16 %v927
    %v1069 = vunpack.c.h.b16 %v927
    %v1070 = vunpack.c.l.b16 %v928
    %v1071 = vunpack.c.h.b16 %v928
    %v1072 = vunpack.c.l.b16 %v929
    %v1073 = vunpack.c.h.b16 %v929
    %v1074 = vunpack.c.l.b16 %v930
    %v1075 = vunpack.c.h.b16 %v930
    %v1076 = vunpack.c.l.b16 %v931
    %v1077 = vunpack.c.h.b16 %v931
    %v1078 = vunpack.c.l.b16 %v932
    %v1079 = vunpack.c.h.b16 %v932
    %v1080 = vunpack.c.l.b16 %v933
    %v1081 = vunpack.c.h.b16 %v933
    %v1082 = vunpack.c.l.b16 %v934
    %v1083 = vunpack.c.h.b16 %v934
    %v1084 = vunpack.c.l.b16 %v935
    %v1085 = vunpack.c.h.b16 %v935
    %v1086 = vunpack.c.l.b16 %v936
    %v1087 = vunpack.c.h.b16 %v936
    %v1088 = vunpack.c.l.b16 %v937
    %v1089 = vunpack.c.h.b16 %v937
    %v1090 = vunpack.c.l.b16 %v938
    %v1091 = vunpack.c.h.b16 %v938
    %v1092 = vunpack.c.l.b16 %v939
    %v1093 = vunpack.c.h.b16 %v939
    %v1094 = vunpack.c.l.b16 %v940
    %v1095 = vunpack.c.h.b16 %v940
    %v1096 = vunpack.c.l.b16 %v941
    %v1097 = vunpack.c.h.b16 %v941
    %v1098 = vunpack.c.l.b16 %v942
    %v1099 = vunpack.c.h.b16 %v942
    %v1100 = vunpack.c.l.b16 %v943
    %v1101 = vunpack.c.h.b16 %v943
    %v1102 = vunpack.c.l.b16 %v944
    %v1103 = vunpack.c.h.b16 %v944
    %v1104 = vunpack.c.l.b16 %v945
    %v1105 = vunpack.c.h.b16 %v945
    %v1106 = vunpack.c.l.b16 %v946
    %v1107 = vunpack.c.h.b16 %v946
    %v1108 = vunpack.c.l.b16 %v947
    %v1109 = vunpack.c.h.b16 %v947
    %v1110 = vunpack.c.l.b16 %v948
    %v1111 = vunpack.c.h.b16 %v948
    %v1112 = vunpack.c.l.b16 %v949
    %v1113 = vunpack.c.h.b16 %v949
    %v1114 = vunpack.c.l.b16 %v950
    %v1115 = vunpack.c.h.b16 %v950
    %v1116 = vunpack.c.l.b16 %v951
    %v1117 = vunpack.c.h.b16 %v951
    %v1118 = vunpack.c.l.b16 %v952
    %v1119 = vunpack.c.h.b16 %v952
    %v1120 = vunpack.c.l.b16 %v953
    %v1121 = vunpack.c.h.b16 %v953
    %v1122 = vunpack.c.l.b16 %v954
    %v1123 = vunpack.c.h.b16 %v954
    %v1124 = vunpack.c.l.b16 %v955
    %v1125 = vunpack.c.h.b16 %v955
    %v1126 = vunpack.c.l.b16 %v956
    %v1127 = vunpack.c.h.b16 %v956
    %v1128 = vunpack.c.l.b16 %v957
    %v1129 = vunpack.c.h.b16 %v957
    %v1130 = vunpack.c.l.b16 %v958
    %v1131 = vunpack.c.h.b16 %v958
    %v1132 = vunpack.c.l.b16 %v959
    %v1133 = vunpack.c.h.b16 %v959
    %v1134 = vunpack.c.l.b16 %v960
    %v1135 = vunpack.c.h.b16 %v960
    %v1136 = vunpack.c.l.b16 %v961
    %v1137 = vunpack.c.h.b16 %v961
    %v1138 = vunpack.c.l.b16 %v962
    %v1139 = vunpack.c.h.b16 %v962
    %v1140 = vunpack.c.l.b16 %v963
    %v1141 = vunpack.c.h.b16 %v963
    %v1142 = vunpack.c.l.b16 %v964
    %v1143 = vunpack.c.h.b16 %v964
    %v1144 = vunpack.c.l.b16 %v965
    %v1145 = vunpack.c.h.b16 %v965
    %v1146 = vunpack.c.l.b16 %v966
    %v1147 = vunpack.c.h.b16 %v966
    %v1148 = vunpack.c.l.b16 %v967
    %v1149 = vunpack.c.h.b16 %v967
    %v1150 = vunpack.c.l.b16 %v968
    %v1151 = vunpack.c.h.b16 %v968
    %v1152 = vunpack.c.l.b16 %v969
    %v1153 = vunpack.c.h.b16 %v969
    %v1154 = vunpack.c.l.b16 %v970
    %v1155 = vunpack.c.h.b16 %v970
    %v1156 = vunpack.c.l.b16 %v971
    %v1157 = vunpack.c.h.b16 %v971
    %v1158 = vunpack.c.l.b16 %v972
    %v1159 = vunpack.c.h.b16 %v972
    %v1160 = vunpack.c.l.b16 %v973
    %v1161 = vunpack.c.h.b16 %v973
    %v1162 = vunpack.c.l.b16 %v974
    %v1163 = vunpack.c.h.b16 %v974
    %v1164 = vunpack.c.l.b16 %v975
    %v1165 = vunpack.c.h.b16 %v975
    %v1166 = vunpack.c.l.b16 %v976
    %v1167 = vunpack.c.h.b16 %v976
    %v1168 = vunpack.c.l.b16 %v977
    %v1169 = vunpack.c.h.b16 %v977
    %v1170 = vunpack.c.l.b16 %v978
    %v1171 = vunpack.c.h.b16 %v978
    %v1172 = vunpack.c.l.b16 %v979
    %v1173 = vunpack.c.h.b16 %v979
    %v1174 = vunpack.c.l.b16 %v980
    %v1175 = vunpack.c.h.b16 %v980
    %v1176 = vunpack.c.l.b16 %v981
    %v1177 = vunpack.c.h.b16 %v981
    %v1178 = vunpack.c.l.b16 %v982
    %v1179 = vunpack.c.h.b16 %v982
    %v1180 = vunpack.c.l.b16 %v983
    %v1181 = vunpack.c.h.b16 %v983
    %v1182 = vunpack.c.l.b16 %v984
    %v1183 = vunpack.c.h.b16 %v984
    %v1184 = vunpack.c.l.b16 %v985
    %v1185 = vunpack.c.h.b16 %v985
    %v1186 = vunpack.c.l.b16 %v986
    %v1187 = vunpack.c.h.b16 %v986
    %v1188 = vunpack.c.l.b16 %v987
    %v1189 = vunpack.c.h.b16 %v987
    %v1190 = vunpack.c.l.b16 %v988
    %v1191 = vunpack.c.h.b16 %v988
    %v1192 = vunpack.c.l.b16 %v989
    %v1193 = vunpack.c.h.b16 %v989
    %v1194 = vpack.c.b16 %v1068, %v1066
    %v1195 = vpack.c.b16 %v1069, %v1067
    %v1196 = vpack.c.b16 %v1072, %v1070
    %v1197 = vpack.c.b16 %v1073, %v1071
    %v1198 = vpack.c.b16 %v1076, %v1074
    %v1199 = vpack.c.b16 %v1077, %v1075
    %v1200 = vpack.c.b16 %v1080, %v1078
    %v1201 = vpack.c.b16 %v1081, %v1079
    %v1202 = vpack.c.b16 %v1084, %v1082
    %v1203 = vpack.c.b16 %v1085, %v1083
    %v1204 = vpack.c.b16 %v1088, %v1086
    %v1205 = vpack.c.b16 %v1089, %v1087
    %v1206 = vpack.c.b16 %v1092, %v1090
    %v1207 = vpack.c.b16 %v1093, %v1091
    %v1208 = vpack.c.b16 %v1096, %v1094
    %v1209 = vpack.c.b16 %v1097, %v1095
    %v1210 = vpack.c.b16 %v1100, %v1098
    %v1211 = vpack.c.b16 %v1101, %v1099
    %v1212 = vpack.c.b16 %v1104, %v1102
    %v1213 = vpack.c.b16 %v1105, %v1103
    %v1214 = vpack.c.b16 %v1108, %v1106
    %v1215 = vpack.c.b16 %v1109, %v1107
    %v1216 = vpack.c.b16 %v1112, %v1110
    %v1217 = vpack.c.b16 %v1113, %v1111
    %v1218 = vpack.c.b16 %v1116, %v1114
    %v1219 = vpack.c.b16 %v1117, %v1115
    %v1220 = vpack.c.b16 %v1120, %v1118
    %v1221 = vpack.c.b16 %v1121, %v1119
    %v1222 = vpack.c.b16 %v1124, %v1122
    %v1223 = vpack.c.b16 %v1125, %v1123
    %v1224 = vpack.c.b16 %v1128, %v1126
    %v1225 = vpack.c.b16 %v1129, %v1127
    %v1226 = vpack.c.b16 %v1132, %v1130
    %v1227 = vpack.c.b16 %v1133, %v1131
    %v1228 = vpack.c.b16 %v1136, %v1134
    %v1229 = vpack.c.b16 %v1137, %v1135
    %v1230 = vpack.c.b16 %v1140, %v1138
    %v1231 = vpack.c.b16 %v1141, %v1139
    %v1232 = vpack.c.b16 %v1144, %v1142
    %v1233 = vpack.c.b16 %v1145, %v1143
    %v1234 = vpack.c.b16 %v1148, %v1146
    %v1235 = vpack.c.b16 %v1149, %v1147
    %v1236 = vpack.c.b16 %v1152, %v1150
    %v1237 = vpack.c.b16 %v1153, %v1151
    %v1238 = vpack.c.b16 %v1156, %v1154
    %v1239 = vpack.c.b16 %v1157, %v1155
    %v1240 = vpack.c.b16 %v1160, %v1158
    %v1241 = vpack.c.b16 %v1161, %v1159
    %v1242 = vpack.c.b16 %v1164, %v1162
    %v1243 = vpack.c.b16 %v1165, %v1163
    %v1244 = vpack.c.b16 %v1168, %v1166
    %v1245 = vpack.c.b16 %v1169, %v1167
    %v1246 = vpack.c.b16 %v1172, %v1170
    %v1247 = vpack.c.b16 %v1173, %v1171
    %v1248 = vpack.c.b16 %v1176, %v1174
    %v1249 = vpack.c.b16 %v1177, %v1175
    %v1250 = vpack.c.b16 %v1180, %v1178
    %v1251 = vpack.c.b16 %v1181, %v1179
    %v1252 = vpack.c.b16 %v1184, %v1182
    %v1253 = vpack.c.b16 %v1185, %v1183
    %v1254 = vpack.c.b16 %v1188, %v1186
    %v1255 = vpack.c.b16 %v1189, %v1187
    %v1256 = vpack.c.b16 %v1192, %v1190
    %v1257 = vpack.c.b16 %v1193, %v1191
    %1322 = vmatprep.subr.bf16.mxu0 %v1195
    %1323 = vmatpush1.bf16.msra.mxu0 %v1194
    %1324 = vmatprep.subr.bf16.mxu0 %v1197
    %1325 = vmatpush1.bf16.msra.mxu0 %v1196
    %1326 = vmatprep.subr.bf16.mxu0 %v1199
    %1327 = vmatpush1.bf16.msra.mxu0 %v1198
    %1328 = vmatprep.subr.bf16.mxu0 %v1201
    %1329 = vmatpush1.bf16.msra.mxu0 %v1200
    %1330 = vmatprep.subr.bf16.mxu0 %v1203
    %1331 = vmatpush1.bf16.msra.mxu0 %v1202
    %1332 = vmatprep.subr.bf16.mxu0 %v1205
    %1333 = vmatpush1.bf16.msra.mxu0 %v1204
    %1334 = vmatprep.subr.bf16.mxu0 %v1207
    %1335 = vmatpush1.bf16.msra.mxu0 %v1206
    %1336 = vmatprep.subr.bf16.mxu0 %v1209
    %1337 = vmatpush1.bf16.msra.mxu0 %v1208
    %1338 = vmatprep.subr.bf16.mxu0 %v1211
    %1339 = vmatpush1.bf16.msra.mxu0 %v1210
    %1340 = vmatprep.subr.bf16.mxu0 %v1213
    %1341 = vmatpush1.bf16.msra.mxu0 %v1212
    %1342 = vmatprep.subr.bf16.mxu0 %v1215
    %1343 = vmatpush1.bf16.msra.mxu0 %v1214
    %1344 = vmatprep.subr.bf16.mxu0 %v1217
    %1345 = vmatpush1.bf16.msra.mxu0 %v1216
    %1346 = vmatprep.subr.bf16.mxu0 %v1219
    %1347 = vmatpush1.bf16.msra.mxu0 %v1218
    %1348 = vmatprep.subr.bf16.mxu0 %v1221
    %1349 = vmatpush1.bf16.msra.mxu0 %v1220
    %1350 = vmatprep.subr.bf16.mxu0 %v1223
    %1351 = vmatpush1.bf16.msra.mxu0 %v1222
    %1352 = vmatprep.subr.bf16.mxu0 %v1225
    %1353 = vmatpush1.bf16.msra.mxu0 %v1224
    %1354 = vmatprep.mubr.bf16.mxu0 %v863
    %1355 = vmatmul.mubr.bf16.gmra.mrb[0].mxu0 %v862
    %v1356 = vpop.f32.mrb[0].mxu0
    %v1357 = vadd.f32 %v995, %v1356
    %v1358 = vpop.f32.mrb[0].mxu0
    %v1359 = vadd.f32 %v999, %v1358
    %v1360 = vpop.f32.mrb[0].mxu0
    %v1361 = vadd.f32 %v995, %v1360
    %v1362 = vpop.f32.mrb[0].mxu0
    %v1363 = vadd.f32 %v999, %v1362
    %1364 = vmatprep.mubr.bf16.mxu0 %v867
    %1365 = vmatmul.mubr.bf16.gmra.mrb[0].mxu0 %v866
    %v1366 = vpop.f32.mrb[0].mxu0
    %v1367 = vadd.f32 %v995, %v1366
    %v1368 = vpop.f32.mrb[0].mxu0
    %v1369 = vadd.f32 %v999, %v1368
    %v1370 = vpop.f32.mrb[0].mxu0
    %v1371 = vadd.f32 %v995, %v1370
    %v1372 = vpop.f32.mrb[0].mxu0
    %v1373 = vadd.f32 %v999, %v1372
    %1374 = vmatprep.mubr.bf16.mxu0 %v871
    %1375 = vmatmul.mubr.bf16.gmra.mrb[0].mxu0 %v870
    %v1376 = vpop.f32.mrb[0].mxu0
    %v1377 = vadd.f32 %v995, %v1376
    %v1378 = vpop.f32.mrb[0].mxu0
    %v1379 = vadd.f32 %v999, %v1378
    %v1380 = vpop.f32.mrb[0].mxu0
    %v1381 = vadd.f32 %v995, %v1380
    %v1382 = vpop.f32.mrb[0].mxu0
    %v1383 = vadd.f32 %v999, %v1382
    %1384 = vmatprep.mubr.bf16.mxu0 %v875
    %1385 = vmatmul.mubr.bf16.gmra.mrb[0].mxu0 %v874
    %v1386 = vpop.f32.mrb[0].mxu0
    %v1387 = vadd.f32 %v995, %v1386
    %v1388 = vpop.f32.mrb[0].mxu0
    %v1389 = vadd.f32 %v999, %v1388
    %v1390 = vpop.f32.mrb[0].mxu0
    %v1391 = vadd.f32 %v995, %v1390
    %v1392 = vpop.f32.mrb[0].mxu0
    %v1393 = vadd.f32 %v999, %v1392
    %1394 = vmatprep.mubr.bf16.mxu0 %v879
    %1395 = vmatmul.mubr.bf16.gmra.mrb[0].mxu0 %v878
    %v1396 = vpop.f32.mrb[0].mxu0
    %v1397 = vadd.f32 %v995, %v1396
    %v1398 = vpop.f32.mrb[0].mxu0
    %v1399 = vadd.f32 %v999, %v1398
    %v1400 = vpop.f32.mrb[0].mxu0
    %v1401 = vadd.f32 %v995, %v1400
    %v1402 = vpop.f32.mrb[0].mxu0
    %v1403 = vadd.f32 %v999, %v1402
    %1404 = vmatprep.mubr.bf16.mxu0 %v883
    %1405 = vmatmul.mubr.bf16.gmra.mrb[0].mxu0 %v882
    %v1406 = vpop.f32.mrb[0].mxu0
    %v1407 = vadd.f32 %v995, %v1406
    %v1408 = vpop.f32.mrb[0].mxu0
    %v1409 = vadd.f32 %v999, %v1408
    %v1410 = vpop.f32.mrb[0].mxu0
    %v1411 = vadd.f32 %v995, %v1410
    %v1412 = vpop.f32.mrb[0].mxu0
    %v1413 = vadd.f32 %v999, %v1412
    %1414 = vmatprep.mubr.bf16.mxu0 %v887
    %1415 = vmatmul.mubr.bf16.gmra.mrb[0].mxu0 %v886
    %v1416 = vpop.f32.mrb[0].mxu0
    %v1417 = vadd.f32 %v995, %v1416
    %v1418 = vpop.f32.mrb[0].mxu0
    %v1419 = vadd.f32 %v999, %v1418
    %v1420 = vpop.f32.mrb[0].mxu0
    %v1421 = vadd.f32 %v995, %v1420
    %v1422 = vpop.f32.mrb[0].mxu0
    %v1423 = vadd.f32 %v999, %v1422
    %1424 = vmatprep.mubr.bf16.mxu0 %v891
    %1425 = vmatmul.mubr.bf16.gmra.mrb[0].mxu0 %v890
    %v1426 = vpop.f32.mrb[0].mxu0
    %v1427 = vadd.f32 %v995, %v1426
    %v1428 = vpop.f32.mrb[0].mxu0
    %v1429 = vadd.f32 %v999, %v1428
    %v1430 = vpop.f32.mrb[0].mxu0
    %v1431 = vadd.f32 %v995, %v1430
    %v1432 = vpop.f32.mrb[0].mxu0
    %v1433 = vadd.f32 %v999, %v1432
    %1434 = vmatprep.mubr.bf16.mxu0 %v895
    %1435 = vmatmul.mubr.bf16.gmra.mrb[0].mxu0 %v894
    %v1436 = vpop.f32.mrb[0].mxu0
    %v1437 = vadd.f32 %v995, %v1436
    %v1438 = vpop.f32.mrb[0].mxu0
    %v1439 = vadd.f32 %v999, %v1438
    %v1440 = vpop.f32.mrb[0].mxu0
    %v1441 = vadd.f32 %v995, %v1440
    %v1442 = vpop.f32.mrb[0].mxu0
    %v1443 = vadd.f32 %v999, %v1442
    %1444 = vmatprep.mubr.bf16.mxu0 %v899
    %1445 = vmatmul.mubr.bf16.gmra.mrb[0].mxu0 %v898
    %v1446 = vpop.f32.mrb[0].mxu0
    %v1447 = vadd.f32 %v995, %v1446
    %v1448 = vpop.f32.mrb[0].mxu0
    %v1449 = vadd.f32 %v999, %v1448
    %v1450 = vpop.f32.mrb[0].mxu0
    %v1451 = vadd.f32 %v995, %v1450
    %v1452 = vpop.f32.mrb[0].mxu0
    %v1453 = vadd.f32 %v999, %v1452
    %1454 = vmatprep.mubr.bf16.mxu0 %v903
    %1455 = vmatmul.mubr.bf16.gmra.mrb[0].mxu0 %v902
    %v1456 = vpop.f32.mrb[0].mxu0
    %v1457 = vadd.f32 %v995, %v1456
    %v1458 = vpop.f32.mrb[0].mxu0
    %v1459 = vadd.f32 %v999, %v1458
    %v1460 = vpop.f32.mrb[0].mxu0
    %v1461 = vadd.f32 %v995, %v1460
    %v1462 = vpop.f32.mrb[0].mxu0
    %v1463 = vadd.f32 %v999, %v1462
    %1464 = vmatprep.mubr.bf16.mxu0 %v907
    %1465 = vmatmul.mubr.bf16.gmra.mrb[0].mxu0 %v906
    %v1466 = vpop.f32.mrb[0].mxu0
    %v1467 = vadd.f32 %v995, %v1466
    %v1468 = vpop.f32.mrb[0].mxu0
    %v1469 = vadd.f32 %v999, %v1468
    %v1470 = vpop.f32.mrb[0].mxu0
    %v1471 = vadd.f32 %v995, %v1470
    %v1472 = vpop.f32.mrb[0].mxu0
    %v1473 = vadd.f32 %v999, %v1472
    %1474 = vmatprep.mubr.bf16.mxu0 %v911
    %1475 = vmatmul.mubr.bf16.gmra.mrb[0].mxu0 %v910
    %v1476 = vpop.f32.mrb[0].mxu0
    %v1477 = vadd.f32 %v995, %v1476
    %v1478 = vpop.f32.mrb[0].mxu0
    %v1479 = vadd.f32 %v999, %v1478
    %v1480 = vpop.f32.mrb[0].mxu0
    %v1481 = vadd.f32 %v995, %v1480
    %v1482 = vpop.f32.mrb[0].mxu0
    %v1483 = vadd.f32 %v999, %v1482
    %1484 = vmatprep.mubr.bf16.mxu0 %v915
    %1485 = vmatmul.mubr.bf16.gmra.mrb[0].mxu0 %v914
    %v1486 = vpop.f32.mrb[0].mxu0
    %v1487 = vadd.f32 %v995, %v1486
    %v1488 = vpop.f32.mrb[0].mxu0
    %v1489 = vadd.f32 %v999, %v1488
    %v1490 = vpop.f32.mrb[0].mxu0
    %v1491 = vadd.f32 %v995, %v1490
    %v1492 = vpop.f32.mrb[0].mxu0
    %v1493 = vadd.f32 %v999, %v1492
    %1494 = vmatprep.mubr.bf16.mxu0 %v919
    %1495 = vmatmul.mubr.bf16.gmra.mrb[0].mxu0 %v918
    %v1496 = vpop.f32.mrb[0].mxu0
    %v1497 = vadd.f32 %v995, %v1496
    %v1498 = vpop.f32.mrb[0].mxu0
    %v1499 = vadd.f32 %v999, %v1498
    %v1500 = vpop.f32.mrb[0].mxu0
    %v1501 = vadd.f32 %v995, %v1500
    %v1502 = vpop.f32.mrb[0].mxu0
    %v1503 = vadd.f32 %v999, %v1502
    %1504 = vmatprep.mubr.bf16.mxu0 %v923
    %1505 = vmatmul.mubr.bf16.gmra.mrb[0].mxu0 %v922
    %v1506 = vpop.f32.mrb[0].mxu0
    %v1507 = vadd.f32 %v995, %v1506
    %v1508 = vpop.f32.mrb[0].mxu0
    %v1509 = vadd.f32 %v999, %v1508
    %v1510 = vpop.f32.mrb[0].mxu0
    %v1511 = vadd.f32 %v995, %v1510
    %v1512 = vpop.f32.mrb[0].mxu0
    %v1513 = vadd.f32 %v999, %v1512
    %1514 = vdwg.mxu0
    %1515 = vmatprep.subr.bf16.mxu0 %v1227
    %1516 = vmatpush1.bf16.msra.mxu0 %v1226
    %1517 = vmatprep.subr.bf16.mxu0 %v1229
    %1518 = vmatpush1.bf16.msra.mxu0 %v1228
    %1519 = vmatprep.subr.bf16.mxu0 %v1231
    %1520 = vmatpush1.bf16.msra.mxu0 %v1230
    %1521 = vmatprep.subr.bf16.mxu0 %v1233
    %1522 = vmatpush1.bf16.msra.mxu0 %v1232
    %1523 = vmatprep.subr.bf16.mxu0 %v1235
    %1524 = vmatpush1.bf16.msra.mxu0 %v1234
    %1525 = vmatprep.subr.bf16.mxu0 %v1237
    %1526 = vmatpush1.bf16.msra.mxu0 %v1236
    %1527 = vmatprep.subr.bf16.mxu0 %v1239
    %1528 = vmatpush1.bf16.msra.mxu0 %v1238
    %1529 = vmatprep.subr.bf16.mxu0 %v1241
    %1530 = vmatpush1.bf16.msra.mxu0 %v1240
    %1531 = vmatprep.subr.bf16.mxu0 %v1243
    %1532 = vmatpush1.bf16.msra.mxu0 %v1242
    %1533 = vmatprep.subr.bf16.mxu0 %v1245
    %1534 = vmatpush1.bf16.msra.mxu0 %v1244
    %1535 = vmatprep.subr.bf16.mxu0 %v1247
    %1536 = vmatpush1.bf16.msra.mxu0 %v1246
    %1537 = vmatprep.subr.bf16.mxu0 %v1249
    %1538 = vmatpush1.bf16.msra.mxu0 %v1248
    %1539 = vmatprep.subr.bf16.mxu0 %v1251
    %1540 = vmatpush1.bf16.msra.mxu0 %v1250
    %1541 = vmatprep.subr.bf16.mxu0 %v1253
    %1542 = vmatpush1.bf16.msra.mxu0 %v1252
    %1543 = vmatprep.subr.bf16.mxu0 %v1255
    %1544 = vmatpush1.bf16.msra.mxu0 %v1254
    %1545 = vmatprep.subr.bf16.mxu0 %v1257
    %1546 = vmatpush1.bf16.msra.mxu0 %v1256
    %1547 = vmatprep.mubr.bf16.mxu0 %v865
    %1548 = vmatmul.mubr.bf16.gmra.mrb[0].mxu0 %v864
    %v1549 = vpop.f32.mrb[0].mxu0
    %v1550 = vadd.f32 %v1357, %v1549
    %v1551 = vpop.f32.mrb[0].mxu0
    %v1552 = vadd.f32 %v1359, %v1551
    %v1553 = vpop.f32.mrb[0].mxu0
    %v1554 = vadd.f32 %v1361, %v1553
    %v1555 = vpop.f32.mrb[0].mxu0
    %v1556 = vadd.f32 %v1363, %v1555
    %1557 = vmatprep.mubr.bf16.mxu0 %v869
    %1558 = vmatmul.mubr.bf16.gmra.mrb[0].mxu0 %v868
    %v1559 = vpop.f32.mrb[0].mxu0
    %v1560 = vadd.f32 %v1367, %v1559
    %v1561 = vpop.f32.mrb[0].mxu0
    %v1562 = vadd.f32 %v1369, %v1561
    %v1563 = vpop.f32.mrb[0].mxu0
    %v1564 = vadd.f32 %v1371, %v1563
    %v1565 = vpop.f32.mrb[0].mxu0
    %v1566 = vadd.f32 %v1373, %v1565
    %1567 = vmatprep.mubr.bf16.mxu0 %v873
    %1568 = vmatmul.mubr.bf16.gmra.mrb[0].mxu0 %v872
    %v1569 = vpop.f32.mrb[0].mxu0
    %v1570 = vadd.f32 %v1377, %v1569
    %v1571 = vpop.f32.mrb[0].mxu0
    %v1572 = vadd.f32 %v1379, %v1571
    %v1573 = vpop.f32.mrb[0].mxu0
    %v1574 = vadd.f32 %v1381, %v1573
    %v1575 = vpop.f32.mrb[0].mxu0
    %v1576 = vadd.f32 %v1383, %v1575
    %1577 = vmatprep.mubr.bf16.mxu0 %v877
    %1578 = vmatmul.mubr.bf16.gmra.mrb[0].mxu0 %v876
    %v1579 = vpop.f32.mrb[0].mxu0
    %v1580 = vadd.f32 %v1387, %v1579
    %v1581 = vpop.f32.mrb[0].mxu0
    %v1582 = vadd.f32 %v1389, %v1581
    %v1583 = vpop.f32.mrb[0].mxu0
    %v1584 = vadd.f32 %v1391, %v1583
    %v1585 = vpop.f32.mrb[0].mxu0
    %v1586 = vadd.f32 %v1393, %v1585
    %1587 = vmatprep.mubr.bf16.mxu0 %v881
    %1588 = vmatmul.mubr.bf16.gmra.mrb[0].mxu0 %v880
    %v1589 = vpop.f32.mrb[0].mxu0
    %v1590 = vadd.f32 %v1397, %v1589
    %v1591 = vpop.f32.mrb[0].mxu0
    %v1592 = vadd.f32 %v1399, %v1591
    %v1593 = vpop.f32.mrb[0].mxu0
    %v1594 = vadd.f32 %v1401, %v1593
    %v1595 = vpop.f32.mrb[0].mxu0
    %v1596 = vadd.f32 %v1403, %v1595
    %1597 = vmatprep.mubr.bf16.mxu0 %v885
    %1598 = vmatmul.mubr.bf16.gmra.mrb[0].mxu0 %v884
    %v1599 = vpop.f32.mrb[0].mxu0
    %v1600 = vadd.f32 %v1407, %v1599
    %v1601 = vpop.f32.mrb[0].mxu0
    %v1602 = vadd.f32 %v1409, %v1601
    %v1603 = vpop.f32.mrb[0].mxu0
    %v1604 = vadd.f32 %v1411, %v1603
    %v1605 = vpop.f32.mrb[0].mxu0
    %v1606 = vadd.f32 %v1413, %v1605
    %1607 = vmatprep.mubr.bf16.mxu0 %v889
    %1608 = vmatmul.mubr.bf16.gmra.mrb[0].mxu0 %v888
    %v1609 = vpop.f32.mrb[0].mxu0
    %v1610 = vadd.f32 %v1417, %v1609
    %v1611 = vpop.f32.mrb[0].mxu0
    %v1612 = vadd.f32 %v1419, %v1611
    %v1613 = vpop.f32.mrb[0].mxu0
    %v1614 = vadd.f32 %v1421, %v1613
    %v1615 = vpop.f32.mrb[0].mxu0
    %v1616 = vadd.f32 %v1423, %v1615
    %1617 = vmatprep.mubr.bf16.mxu0 %v893
    %1618 = vmatmul.mubr.bf16.gmra.mrb[0].mxu0 %v892
    %v1619 = vpop.f32.mrb[0].mxu0
    %v1620 = vadd.f32 %v1427, %v1619
    %v1621 = vpop.f32.mrb[0].mxu0
    %v1622 = vadd.f32 %v1429, %v1621
    %v1623 = vpop.f32.mrb[0].mxu0
    %v1624 = vadd.f32 %v1431, %v1623
    %v1625 = vpop.f32.mrb[0].mxu0
    %v1626 = vadd.f32 %v1433, %v1625
    %1627 = vmatprep.mubr.bf16.mxu0 %v897
    %1628 = vmatmul.mubr.bf16.gmra.mrb[0].mxu0 %v896
    %v1629 = vpop.f32.mrb[0].mxu0
    %v1630 = vadd.f32 %v1437, %v1629
    %v1631 = vpop.f32.mrb[0].mxu0
    %v1632 = vadd.f32 %v1439, %v1631
    %v1633 = vpop.f32.mrb[0].mxu0
    %v1634 = vadd.f32 %v1441, %v1633
    %v1635 = vpop.f32.mrb[0].mxu0
    %v1636 = vadd.f32 %v1443, %v1635
    %1637 = vmatprep.mubr.bf16.mxu0 %v901
    %1638 = vmatmul.mubr.bf16.gmra.mrb[0].mxu0 %v900
    %v1639 = vpop.f32.mrb[0].mxu0
    %v1640 = vadd.f32 %v1447, %v1639
    %v1641 = vpop.f32.mrb[0].mxu0
    %v1642 = vadd.f32 %v1449, %v1641
    %v1643 = vpop.f32.mrb[0].mxu0
    %v1644 = vadd.f32 %v1451, %v1643
    %v1645 = vpop.f32.mrb[0].mxu0
    %v1646 = vadd.f32 %v1453, %v1645
    %1647 = vmatprep.mubr.bf16.mxu0 %v905
    %1648 = vmatmul.mubr.bf16.gmra.mrb[0].mxu0 %v904
    %v1649 = vpop.f32.mrb[0].mxu0
    %v1650 = vadd.f32 %v1457, %v1649
    %v1651 = vpop.f32.mrb[0].mxu0
    %v1652 = vadd.f32 %v1459, %v1651
    %v1653 = vpop.f32.mrb[0].mxu0
    %v1654 = vadd.f32 %v1461, %v1653
    %v1655 = vpop.f32.mrb[0].mxu0
    %v1656 = vadd.f32 %v1463, %v1655
    %1657 = vmatprep.mubr.bf16.mxu0 %v909
    %1658 = vmatmul.mubr.bf16.gmra.mrb[0].mxu0 %v908
    %v1659 = vpop.f32.mrb[0].mxu0
    %v1660 = vadd.f32 %v1467, %v1659
    %v1661 = vpop.f32.mrb[0].mxu0
    %v1662 = vadd.f32 %v1469, %v1661
    %v1663 = vpop.f32.mrb[0].mxu0
    %v1664 = vadd.f32 %v1471, %v1663
    %v1665 = vpop.f32.mrb[0].mxu0
    %v1666 = vadd.f32 %v1473, %v1665
    %1667 = vmatprep.mubr.bf16.mxu0 %v913
    %1668 = vmatmul.mubr.bf16.gmra.mrb[0].mxu0 %v912
    %v1669 = vpop.f32.mrb[0].mxu0
    %v1670 = vadd.f32 %v1477, %v1669
    %v1671 = vpop.f32.mrb[0].mxu0
    %v1672 = vadd.f32 %v1479, %v1671
    %v1673 = vpop.f32.mrb[0].mxu0
    %v1674 = vadd.f32 %v1481, %v1673
    %v1675 = vpop.f32.mrb[0].mxu0
    %v1676 = vadd.f32 %v1483, %v1675
    %1677 = vmatprep.mubr.bf16.mxu0 %v917
    %1678 = vmatmul.mubr.bf16.gmra.mrb[0].mxu0 %v916
    %v1679 = vpop.f32.mrb[0].mxu0
    %v1680 = vadd.f32 %v1487, %v1679
    %v1681 = vpop.f32.mrb[0].mxu0
    %v1682 = vadd.f32 %v1489, %v1681
    %v1683 = vpop.f32.mrb[0].mxu0
    %v1684 = vadd.f32 %v1491, %v1683
    %v1685 = vpop.f32.mrb[0].mxu0
    %v1686 = vadd.f32 %v1493, %v1685
    %1687 = vmatprep.mubr.bf16.mxu0 %v921
    %1688 = vmatmul.mubr.bf16.gmra.mrb[0].mxu0 %v920
    %v1689 = vpop.f32.mrb[0].mxu0
    %v1690 = vadd.f32 %v1497, %v1689
    %v1691 = vpop.f32.mrb[0].mxu0
    %v1692 = vadd.f32 %v1499, %v1691
    %v1693 = vpop.f32.mrb[0].mxu0
    %v1694 = vadd.f32 %v1501, %v1693
    %v1695 = vpop.f32.mrb[0].mxu0
    %v1696 = vadd.f32 %v1503, %v1695
    %1697 = vmatprep.mubr.bf16.mxu0 %v925
    %1698 = vmatmul.mubr.bf16.gmra.mrb[0].mxu0 %v924
    %v1699 = vpop.f32.mrb[0].mxu0
    %v1700 = vadd.f32 %v1507, %v1699
    %v1701 = vpop.f32.mrb[0].mxu0
    %v1702 = vadd.f32 %v1509, %v1701
    %v1703 = vpop.f32.mrb[0].mxu0
    %v1704 = vadd.f32 %v1511, %v1703
    %v1705 = vpop.f32.mrb[0].mxu0
    %v1706 = vadd.f32 %v1513, %v1705
    %1707 = vdwg.mxu0
    %v1708 = vmax.f32 %v1550, 0.0
    %v1709 = vmax.f32 %v1552, 0.0
    %v1710 = vmax.f32 %v1554, 0.0
    %v1711 = vmax.f32 %v1556, 0.0
    %v1712 = vmax.f32 %v1560, 0.0
    %v1713 = vmax.f32 %v1562, 0.0
    %v1714 = vmax.f32 %v1564, 0.0
    %v1715 = vmax.f32 %v1566, 0.0
    %v1716 = vmax.f32 %v1570, 0.0
    %v1717 = vmax.f32 %v1572, 0.0
    %v1718 = vmax.f32 %v1574, 0.0
    %v1719 = vmax.f32 %v1576, 0.0
    %v1720 = vmax.f32 %v1580, 0.0
    %v1721 = vmax.f32 %v1582, 0.0
    %v1722 = vmax.f32 %v1584, 0.0
    %v1723 = vmax.f32 %v1586, 0.0
    %v1724 = vmax.f32 %v1590, 0.0
    %v1725 = vmax.f32 %v1592, 0.0
    %v1726 = vmax.f32 %v1594, 0.0
    %v1727 = vmax.f32 %v1596, 0.0
    %v1728 = vmax.f32 %v1600, 0.0
    %v1729 = vmax.f32 %v1602, 0.0
    %v1730 = vmax.f32 %v1604, 0.0
    %v1731 = vmax.f32 %v1606, 0.0
    %v1732 = vmax.f32 %v1610, 0.0
    %v1733 = vmax.f32 %v1612, 0.0
    %v1734 = vmax.f32 %v1614, 0.0
    %v1735 = vmax.f32 %v1616, 0.0
    %v1736 = vmax.f32 %v1620, 0.0
    %v1737 = vmax.f32 %v1622, 0.0
    %v1738 = vmax.f32 %v1624, 0.0
    %v1739 = vmax.f32 %v1626, 0.0
    %v1740 = vmax.f32 %v1630, 0.0
    %v1741 = vmax.f32 %v1632, 0.0
    %v1742 = vmax.f32 %v1634, 0.0
    %v1743 = vmax.f32 %v1636, 0.0
    %v1744 = vmax.f32 %v1640, 0.0
    %v1745 = vmax.f32 %v1642, 0.0
    %v1746 = vmax.f32 %v1644, 0.0
    %v1747 = vmax.f32 %v1646, 0.0
    %v1748 = vmax.f32 %v1650, 0.0
    %v1749 = vmax.f32 %v1652, 0.0
    %v1750 = vmax.f32 %v1654, 0.0
    %v1751 = vmax.f32 %v1656, 0.0
    %v1752 = vmax.f32 %v1660, 0.0
    %v1753 = vmax.f32 %v1662, 0.0
    %v1754 = vmax.f32 %v1664, 0.0
    %v1755 = vmax.f32 %v1666, 0.0
    %v1756 = vmax.f32 %v1670, 0.0
    %v1757 = vmax.f32 %v1672, 0.0
    %v1758 = vmax.f32 %v1674, 0.0
    %v1759 = vmax.f32 %v1676, 0.0
    %v1760 = vmax.f32 %v1680, 0.0
    %v1761 = vmax.f32 %v1682, 0.0
    %v1762 = vmax.f32 %v1684, 0.0
    %v1763 = vmax.f32 %v1686, 0.0
    %v1764 = vmax.f32 %v1690, 0.0
    %v1765 = vmax.f32 %v1692, 0.0
    %v1766 = vmax.f32 %v1694, 0.0
    %v1767 = vmax.f32 %v1696, 0.0
    %v1768 = vmax.f32 %v1700, 0.0
    %v1769 = vmax.f32 %v1702, 0.0
    %v1770 = vmax.f32 %v1704, 0.0
    %v1771 = vmax.f32 %v1706, 0.0
    %v1772 = vpack.c.bf16 %v1710, %v1708
    %v1773 = vpack.c.bf16 %v1711, %v1709
    %v1774 = vpack.c.bf16 %v1714, %v1712
    %v1775 = vpack.c.bf16 %v1715, %v1713
    %v1776 = vpack.c.bf16 %v1718, %v1716
    %v1777 = vpack.c.bf16 %v1719, %v1717
    %v1778 = vpack.c.bf16 %v1722, %v1720
    %v1779 = vpack.c.bf16 %v1723, %v1721
    %v1780 = vpack.c.bf16 %v1726, %v1724
    %v1781 = vpack.c.bf16 %v1727, %v1725
    %v1782 = vpack.c.bf16 %v1730, %v1728
    %v1783 = vpack.c.bf16 %v1731, %v1729
    %v1784 = vpack.c.bf16 %v1734, %v1732
    %v1785 = vpack.c.bf16 %v1735, %v1733
    %v1786 = vpack.c.bf16 %v1738, %v1736
    %v1787 = vpack.c.bf16 %v1739, %v1737
    %v1788 = vpack.c.bf16 %v1742, %v1740
    %v1789 = vpack.c.bf16 %v1743, %v1741
    %v1790 = vpack.c.bf16 %v1746, %v1744
    %v1791 = vpack.c.bf16 %v1747, %v1745
    %v1792 = vpack.c.bf16 %v1750, %v1748
    %v1793 = vpack.c.bf16 %v1751, %v1749
    %v1794 = vpack.c.bf16 %v1754, %v1752
    %v1795 = vpack.c.bf16 %v1755, %v1753
    %v1796 = vpack.c.bf16 %v1758, %v1756
    %v1797 = vpack.c.bf16 %v1759, %v1757
    %v1798 = vpack.c.bf16 %v1762, %v1760
    %v1799 = vpack.c.bf16 %v1763, %v1761
    %v1800 = vpack.c.bf16 %v1766, %v1764
    %v1801 = vpack.c.bf16 %v1767, %v1765
    %v1802 = vpack.c.bf16 %v1770, %v1768
    %v1803 = vpack.c.bf16 %v1771, %v1769
    %v1804 = vld [vmem:[%s5] sm:$0xf]
    %v1805 = vld [vmem:[%s5 + $0x4] sm:$0xf]
    %v1806 = vld [vmem:[%s5 + $0x8] sm:$0xf]
    %v1807 = vld [vmem:[%s5 + $0xc] sm:$0xf]
    %v1808 = vld [vmem:[%s5 + $0x10] sm:$0xf]
    %v1809 = vld [vmem:[%s5 + $0x14] sm:$0xf]
    %v1810 = vld [vmem:[%s5 + $0x18] sm:$0xf]
    %v1811 = vld [vmem:[%s5 + $0x1c] sm:$0xf]
    %v1812 = vld [vmem:[%s5 + $0x20] sm:$0xf]
    %v1813 = vld [vmem:[%s5 + $0x24] sm:$0xf]
    %v1814 = vld [vmem:[%s5 + $0x28] sm:$0xf]
    %v1815 = vld [vmem:[%s5 + $0x2c] sm:$0xf]
    %v1816 = vld [vmem:[%s5 + $0x30] sm:$0xf]
    %v1817 = vld [vmem:[%s5 + $0x34] sm:$0xf]
    %v1818 = vld [vmem:[%s5 + $0x38] sm:$0xf]
    %v1819 = vld [vmem:[%s5 + $0x3c] sm:$0xf]
    %v1820 = vld [vmem:[%s5 + $0x40] sm:$0xf]
    %v1821 = vld [vmem:[%s5 + $0x44] sm:$0xf]
    %v1822 = vld [vmem:[%s5 + $0x48] sm:$0xf]
    %v1823 = vld [vmem:[%s5 + $0x4c] sm:$0xf]
    %v1824 = vld [vmem:[%s5 + $0x50] sm:$0xf]
    %v1825 = vld [vmem:[%s5 + $0x54] sm:$0xf]
    %v1826 = vld [vmem:[%s5 + $0x58] sm:$0xf]
    %v1827 = vld [vmem:[%s5 + $0x5c] sm:$0xf]
    %v1828 = vld [vmem:[%s5 + $0x60] sm:$0xf]
    %v1829 = vld [vmem:[%s5 + $0x64] sm:$0xf]
    %v1830 = vld [vmem:[%s5 + $0x68] sm:$0xf]
    %v1831 = vld [vmem:[%s5 + $0x6c] sm:$0xf]
    %v1832 = vld [vmem:[%s5 + $0x70] sm:$0xf]
    %v1833 = vld [vmem:[%s5 + $0x74] sm:$0xf]
    %v1834 = vld [vmem:[%s5 + $0x78] sm:$0xf]
    %v1835 = vld [vmem:[%s5 + $0x7c] sm:$0xf]
    %v1836 = vld [vmem:[%s6] sm:$0x1]
    %v1838 = vlaneseq
    %v1839 = vshrl.u32 %v1838, 7
    %v1840 = vsub.s32 0, %v1839
    %v1841 = vrot.slane %v1836, %v1840
    %v1875 = vunpack.c.l.b16 %v1804
    %v1876 = vunpack.c.l.b16 %v1805
    %v1877 = vunpack.c.l.b16 %v1806
    %v1878 = vunpack.c.l.b16 %v1807
    %v1879 = vunpack.c.l.b16 %v1808
    %v1880 = vunpack.c.l.b16 %v1809
    %v1881 = vunpack.c.l.b16 %v1810
    %v1882 = vunpack.c.l.b16 %v1811
    %v1883 = vunpack.c.l.b16 %v1812
    %v1884 = vunpack.c.l.b16 %v1813
    %v1885 = vunpack.c.l.b16 %v1814
    %v1886 = vunpack.c.l.b16 %v1815
    %v1887 = vunpack.c.l.b16 %v1816
    %v1888 = vunpack.c.l.b16 %v1817
    %v1889 = vunpack.c.l.b16 %v1818
    %v1890 = vunpack.c.l.b16 %v1819
    %v1891 = vunpack.c.l.b16 %v1820
    %v1892 = vunpack.c.l.b16 %v1821
    %v1893 = vunpack.c.l.b16 %v1822
    %v1894 = vunpack.c.l.b16 %v1823
    %v1895 = vunpack.c.l.b16 %v1824
    %v1896 = vunpack.c.l.b16 %v1825
    %v1897 = vunpack.c.l.b16 %v1826
    %v1898 = vunpack.c.l.b16 %v1827
    %v1899 = vunpack.c.l.b16 %v1828
    %v1900 = vunpack.c.l.b16 %v1829
    %v1901 = vunpack.c.l.b16 %v1830
    %v1902 = vunpack.c.l.b16 %v1831
    %v1903 = vunpack.c.l.b16 %v1832
    %v1904 = vunpack.c.l.b16 %v1833
    %v1905 = vunpack.c.l.b16 %v1834
    %v1906 = vunpack.c.l.b16 %v1835
    %v1907 = vpack.c.b16 %v1876, %v1875
    %v1908 = vpack.c.b16 %v1878, %v1877
    %v1909 = vpack.c.b16 %v1880, %v1879
    %v1910 = vpack.c.b16 %v1882, %v1881
    %v1911 = vpack.c.b16 %v1884, %v1883
    %v1912 = vpack.c.b16 %v1886, %v1885
    %v1913 = vpack.c.b16 %v1888, %v1887
    %v1914 = vpack.c.b16 %v1890, %v1889
    %v1915 = vpack.c.b16 %v1892, %v1891
    %v1916 = vpack.c.b16 %v1894, %v1893
    %v1917 = vpack.c.b16 %v1896, %v1895
    %v1918 = vpack.c.b16 %v1898, %v1897
    %v1919 = vpack.c.b16 %v1900, %v1899
    %v1920 = vpack.c.b16 %v1902, %v1901
    %v1921 = vpack.c.b16 %v1904, %v1903
    %v1922 = vpack.c.b16 %v1906, %v1905
    %1939 = vmatprep.subr.bf16.mxu0 0
    %1940 = vmatpush1.bf16.msra.mxu0 %v1907
    %1941 = vmatprep.subr.bf16.mxu0 0
    %1942 = vmatpush1.bf16.msra.mxu0 %v1908
    %1943 = vmatprep.subr.bf16.mxu0 0
    %1944 = vmatpush1.bf16.msra.mxu0 %v1909
    %1945 = vmatprep.subr.bf16.mxu0 0
    %1946 = vmatpush1.bf16.msra.mxu0 %v1910
    %1947 = vmatprep.subr.bf16.mxu0 0
    %1948 = vmatpush1.bf16.msra.mxu0 %v1911
    %1949 = vmatprep.subr.bf16.mxu0 0
    %1950 = vmatpush1.bf16.msra.mxu0 %v1912
    %1951 = vmatprep.subr.bf16.mxu0 0
    %1952 = vmatpush1.bf16.msra.mxu0 %v1913
    %1953 = vmatprep.subr.bf16.mxu0 0
    %1954 = vmatpush1.bf16.msra.mxu0 %v1914
    %1955 = vmatprep.subr.bf16.mxu0 0
    %1956 = vmatpush1.bf16.msra.mxu0 %v1915
    %1957 = vmatprep.subr.bf16.mxu0 0
    %1958 = vmatpush1.bf16.msra.mxu0 %v1916
    %1959 = vmatprep.subr.bf16.mxu0 0
    %1960 = vmatpush1.bf16.msra.mxu0 %v1917
    %1961 = vmatprep.subr.bf16.mxu0 0
    %1962 = vmatpush1.bf16.msra.mxu0 %v1918
    %1963 = vmatprep.subr.bf16.mxu0 0
    %1964 = vmatpush1.bf16.msra.mxu0 %v1919
    %1965 = vmatprep.subr.bf16.mxu0 0
    %1966 = vmatpush1.bf16.msra.mxu0 %v1920
    %1967 = vmatprep.subr.bf16.mxu0 0
    %1968 = vmatpush1.bf16.msra.mxu0 %v1921
    %1969 = vmatprep.subr.bf16.mxu0 0
    %1970 = vmatpush1.bf16.msra.mxu0 %v1922
    %1971 = vmatprep.mubr.bf16.mxu0 %v1773
    %1972 = vmatmul.mubr.bf16.gmra.mrb[0].mxu0 %v1772
    %v1973 = vpop.f32.mrb[0].mxu0
    %v1974 = vadd.f32 %v1841, %v1973
    %v1975 = vpop.f32.mrb[0].mxu0
    %v1976 = vpop.f32.mrb[0].mxu0
    %v1977 = vadd.f32 %v1841, %v1976
    %v1978 = vpop.f32.mrb[0].mxu0
    %1979 = vmatprep.mubr.bf16.mxu0 %v1775
    %1980 = vmatmul.mubr.bf16.gmra.mrb[0].mxu0 %v1774
    %v1981 = vpop.f32.mrb[0].mxu0
    %v1982 = vadd.f32 %v1841, %v1981
    %v1983 = vpop.f32.mrb[0].mxu0
    %v1984 = vpop.f32.mrb[0].mxu0
    %v1985 = vadd.f32 %v1841, %v1984
    %v1986 = vpop.f32.mrb[0].mxu0
    %1987 = vmatprep.mubr.bf16.mxu0 %v1777
    %1988 = vmatmul.mubr.bf16.gmra.mrb[0].mxu0 %v1776
    %v1989 = vpop.f32.mrb[0].mxu0
    %v1990 = vadd.f32 %v1841, %v1989
    %v1991 = vpop.f32.mrb[0].mxu0
    %v1992 = vpop.f32.mrb[0].mxu0
    %v1993 = vadd.f32 %v1841, %v1992
    %v1994 = vpop.f32.mrb[0].mxu0
    %1995 = vmatprep.mubr.bf16.mxu0 %v1779
    %1996 = vmatmul.mubr.bf16.gmra.mrb[0].mxu0 %v1778
    %v1997 = vpop.f32.mrb[0].mxu0
    %v1998 = vadd.f32 %v1841, %v1997
    %v1999 = vpop.f32.mrb[0].mxu0
    %v2000 = vpop.f32.mrb[0].mxu0
    %v2001 = vadd.f32 %v1841, %v2000
    %v2002 = vpop.f32.mrb[0].mxu0
    %2003 = vmatprep.mubr.bf16.mxu0 %v1781
    %2004 = vmatmul.mubr.bf16.gmra.mrb[0].mxu0 %v1780
    %v2005 = vpop.f32.mrb[0].mxu0
    %v2006 = vadd.f32 %v1841, %v2005
    %v2007 = vpop.f32.mrb[0].mxu0
    %v2008 = vpop.f32.mrb[0].mxu0
    %v2009 = vadd.f32 %v1841, %v2008
    %v2010 = vpop.f32.mrb[0].mxu0
    %2011 = vmatprep.mubr.bf16.mxu0 %v1783
    %2012 = vmatmul.mubr.bf16.gmra.mrb[0].mxu0 %v1782
    %v2013 = vpop.f32.mrb[0].mxu0
    %v2014 = vadd.f32 %v1841, %v2013
    %v2015 = vpop.f32.mrb[0].mxu0
    %v2016 = vpop.f32.mrb[0].mxu0
    %v2017 = vadd.f32 %v1841, %v2016
    %v2018 = vpop.f32.mrb[0].mxu0
    %2019 = vmatprep.mubr.bf16.mxu0 %v1785
    %2020 = vmatmul.mubr.bf16.gmra.mrb[0].mxu0 %v1784
    %v2021 = vpop.f32.mrb[0].mxu0
    %v2022 = vadd.f32 %v1841, %v2021
    %v2023 = vpop.f32.mrb[0].mxu0
    %v2024 = vpop.f32.mrb[0].mxu0
    %v2025 = vadd.f32 %v1841, %v2024
    %v2026 = vpop.f32.mrb[0].mxu0
    %2027 = vmatprep.mubr.bf16.mxu0 %v1787
    %2028 = vmatmul.mubr.bf16.gmra.mrb[0].mxu0 %v1786
    %v2029 = vpop.f32.mrb[0].mxu0
    %v2030 = vadd.f32 %v1841, %v2029
    %v2031 = vpop.f32.mrb[0].mxu0
    %v2032 = vpop.f32.mrb[0].mxu0
    %v2033 = vadd.f32 %v1841, %v2032
    %v2034 = vpop.f32.mrb[0].mxu0
    %2035 = vmatprep.mubr.bf16.mxu0 %v1789
    %2036 = vmatmul.mubr.bf16.gmra.mrb[0].mxu0 %v1788
    %v2037 = vpop.f32.mrb[0].mxu0
    %v2038 = vadd.f32 %v1841, %v2037
    %v2039 = vpop.f32.mrb[0].mxu0
    %v2040 = vpop.f32.mrb[0].mxu0
    %v2041 = vadd.f32 %v1841, %v2040
    %v2042 = vpop.f32.mrb[0].mxu0
    %2043 = vmatprep.mubr.bf16.mxu0 %v1791
    %2044 = vmatmul.mubr.bf16.gmra.mrb[0].mxu0 %v1790
    %v2045 = vpop.f32.mrb[0].mxu0
    %v2046 = vadd.f32 %v1841, %v2045
    %v2047 = vpop.f32.mrb[0].mxu0
    %v2048 = vpop.f32.mrb[0].mxu0
    %v2049 = vadd.f32 %v1841, %v2048
    %v2050 = vpop.f32.mrb[0].mxu0
    %2051 = vmatprep.mubr.bf16.mxu0 %v1793
    %2052 = vmatmul.mubr.bf16.gmra.mrb[0].mxu0 %v1792
    %v2053 = vpop.f32.mrb[0].mxu0
    %v2054 = vadd.f32 %v1841, %v2053
    %v2055 = vpop.f32.mrb[0].mxu0
    %v2056 = vpop.f32.mrb[0].mxu0
    %v2057 = vadd.f32 %v1841, %v2056
    %v2058 = vpop.f32.mrb[0].mxu0
    %2059 = vmatprep.mubr.bf16.mxu0 %v1795
    %2060 = vmatmul.mubr.bf16.gmra.mrb[0].mxu0 %v1794
    %v2061 = vpop.f32.mrb[0].mxu0
    %v2062 = vadd.f32 %v1841, %v2061
    %v2063 = vpop.f32.mrb[0].mxu0
    %v2064 = vpop.f32.mrb[0].mxu0
    %v2065 = vadd.f32 %v1841, %v2064
    %v2066 = vpop.f32.mrb[0].mxu0
    %2067 = vmatprep.mubr.bf16.mxu0 %v1797
    %2068 = vmatmul.mubr.bf16.gmra.mrb[0].mxu0 %v1796
    %v2069 = vpop.f32.mrb[0].mxu0
    %v2070 = vadd.f32 %v1841, %v2069
    %v2071 = vpop.f32.mrb[0].mxu0
    %v2072 = vpop.f32.mrb[0].mxu0
    %v2073 = vadd.f32 %v1841, %v2072
    %v2074 = vpop.f32.mrb[0].mxu0
    %2075 = vmatprep.mubr.bf16.mxu0 %v1799
    %2076 = vmatmul.mubr.bf16.gmra.mrb[0].mxu0 %v1798
    %v2077 = vpop.f32.mrb[0].mxu0
    %v2078 = vadd.f32 %v1841, %v2077
    %v2079 = vpop.f32.mrb[0].mxu0
    %v2080 = vpop.f32.mrb[0].mxu0
    %v2081 = vadd.f32 %v1841, %v2080
    %v2082 = vpop.f32.mrb[0].mxu0
    %2083 = vmatprep.mubr.bf16.mxu0 %v1801
    %2084 = vmatmul.mubr.bf16.gmra.mrb[0].mxu0 %v1800
    %v2085 = vpop.f32.mrb[0].mxu0
    %v2086 = vadd.f32 %v1841, %v2085
    %v2087 = vpop.f32.mrb[0].mxu0
    %v2088 = vpop.f32.mrb[0].mxu0
    %v2089 = vadd.f32 %v1841, %v2088
    %v2090 = vpop.f32.mrb[0].mxu0
    %2091 = vmatprep.mubr.bf16.mxu0 %v1803
    %2092 = vmatmul.mubr.bf16.gmra.mrb[0].mxu0 %v1802
    %v2093 = vpop.f32.mrb[0].mxu0
    %v2094 = vadd.f32 %v1841, %v2093
    %v2095 = vpop.f32.mrb[0].mxu0
    %v2096 = vpop.f32.mrb[0].mxu0
    %v2097 = vadd.f32 %v1841, %v2096
    %v2098 = vpop.f32.mrb[0].mxu0
    %2099 = vdwg.mxu0
    %v2100 = vmax.f32 %v1974, 0.0
    %v2101 = vmax.f32 %v1977, 0.0
    %v2102 = vmax.f32 %v1982, 0.0
    %v2103 = vmax.f32 %v1985, 0.0
    %v2104 = vmax.f32 %v1990, 0.0
    %v2105 = vmax.f32 %v1993, 0.0
    %v2106 = vmax.f32 %v1998, 0.0
    %v2107 = vmax.f32 %v2001, 0.0
    %v2108 = vmax.f32 %v2006, 0.0
    %v2109 = vmax.f32 %v2009, 0.0
    %v2110 = vmax.f32 %v2014, 0.0
    %v2111 = vmax.f32 %v2017, 0.0
    %v2112 = vmax.f32 %v2022, 0.0
    %v2113 = vmax.f32 %v2025, 0.0
    %v2114 = vmax.f32 %v2030, 0.0
    %v2115 = vmax.f32 %v2033, 0.0
    %v2116 = vmax.f32 %v2038, 0.0
    %v2117 = vmax.f32 %v2041, 0.0
    %v2118 = vmax.f32 %v2046, 0.0
    %v2119 = vmax.f32 %v2049, 0.0
    %v2120 = vmax.f32 %v2054, 0.0
    %v2121 = vmax.f32 %v2057, 0.0
    %v2122 = vmax.f32 %v2062, 0.0
    %v2123 = vmax.f32 %v2065, 0.0
    %v2124 = vmax.f32 %v2070, 0.0
    %v2125 = vmax.f32 %v2073, 0.0
    %v2126 = vmax.f32 %v2078, 0.0
    %v2127 = vmax.f32 %v2081, 0.0
    %v2128 = vmax.f32 %v2086, 0.0
    %v2129 = vmax.f32 %v2089, 0.0
    %v2130 = vmax.f32 %v2094, 0.0
    %v2131 = vmax.f32 %v2097, 0.0
    %v2132 = vpack.c.bf16 %v2101, %v2100
    %v2133 = vpack.c.bf16 %v2103, %v2102
    %v2134 = vpack.c.bf16 %v2105, %v2104
    %v2135 = vpack.c.bf16 %v2107, %v2106
    %v2136 = vpack.c.bf16 %v2109, %v2108
    %v2137 = vpack.c.bf16 %v2111, %v2110
    %v2138 = vpack.c.bf16 %v2113, %v2112
    %v2139 = vpack.c.bf16 %v2115, %v2114
    %v2140 = vpack.c.bf16 %v2117, %v2116
    %v2141 = vpack.c.bf16 %v2119, %v2118
    %v2142 = vpack.c.bf16 %v2121, %v2120
    %v2143 = vpack.c.bf16 %v2123, %v2122
    %v2144 = vpack.c.bf16 %v2125, %v2124
    %v2145 = vpack.c.bf16 %v2127, %v2126
    %v2146 = vpack.c.bf16 %v2129, %v2128
    %v2147 = vpack.c.bf16 %v2131, %v2130
    %v2148 = vld [vmem:[%s7] sm:$0xf]
    %v2149 = vld [vmem:[%s7 + $0x4] sm:$0xf]
    %v2150 = vld [vmem:[%s7 + $0x8] sm:$0xf]
    %v2151 = vld [vmem:[%s7 + $0xc] sm:$0xf]
    %v2152 = vld [vmem:[%s7 + $0x10] sm:$0xf]
    %v2153 = vld [vmem:[%s7 + $0x14] sm:$0xf]
    %v2154 = vld [vmem:[%s7 + $0x18] sm:$0xf]
    %v2155 = vld [vmem:[%s7 + $0x1c] sm:$0xf]
    %v2156 = vld [vmem:[%s7 + $0x20] sm:$0xf]
    %v2157 = vld [vmem:[%s7 + $0x24] sm:$0xf]
    %v2158 = vld [vmem:[%s7 + $0x28] sm:$0xf]
    %v2159 = vld [vmem:[%s7 + $0x2c] sm:$0xf]
    %v2160 = vld [vmem:[%s7 + $0x30] sm:$0xf]
    %v2161 = vld [vmem:[%s7 + $0x34] sm:$0xf]
    %v2162 = vld [vmem:[%s7 + $0x38] sm:$0xf]
    %v2163 = vld [vmem:[%s7 + $0x3c] sm:$0xf]
    %v2164 = vld [vmem:[%s8] sm:$0x1]
    %v2166 = vlaneseq
    %v2167 = vshrl.u32 %v2166, 7
    %v2168 = vsub.s32 0, %v2167
    %v2169 = vrot.slane %v2164, %v2168
    %v2187 = vunpack.c.l.b16 %v2148
    %v2188 = vunpack.c.l.b16 %v2149
    %v2189 = vunpack.c.l.b16 %v2150
    %v2190 = vunpack.c.l.b16 %v2151
    %v2191 = vunpack.c.l.b16 %v2152
    %v2192 = vunpack.c.l.b16 %v2153
    %v2193 = vunpack.c.l.b16 %v2154
    %v2194 = vunpack.c.l.b16 %v2155
    %v2195 = vunpack.c.l.b16 %v2156
    %v2196 = vunpack.c.l.b16 %v2157
    %v2197 = vunpack.c.l.b16 %v2158
    %v2198 = vunpack.c.l.b16 %v2159
    %v2199 = vunpack.c.l.b16 %v2160
    %v2200 = vunpack.c.l.b16 %v2161
    %v2201 = vunpack.c.l.b16 %v2162
    %v2202 = vunpack.c.l.b16 %v2163
    %v2203 = vpack.c.b16 %v2188, %v2187
    %v2204 = vpack.c.b16 %v2190, %v2189
    %v2205 = vpack.c.b16 %v2192, %v2191
    %v2206 = vpack.c.b16 %v2194, %v2193
    %v2207 = vpack.c.b16 %v2196, %v2195
    %v2208 = vpack.c.b16 %v2198, %v2197
    %v2209 = vpack.c.b16 %v2200, %v2199
    %v2210 = vpack.c.b16 %v2202, %v2201
    %2219 = vmatprep.subr.bf16.mxu0 0
    %2220 = vmatpush1.bf16.msra.mxu0 %v2203
    %2221 = vmatprep.subr.bf16.mxu0 0
    %2222 = vmatpush1.bf16.msra.mxu0 %v2204
    %2223 = vmatprep.subr.bf16.mxu0 0
    %2224 = vmatpush1.bf16.msra.mxu0 %v2205
    %2225 = vmatprep.subr.bf16.mxu0 0
    %2226 = vmatpush1.bf16.msra.mxu0 %v2206
    %2227 = vmatprep.subr.bf16.mxu0 0
    %2228 = vmatpush1.bf16.msra.mxu0 %v2207
    %2229 = vmatprep.subr.bf16.mxu0 0
    %2230 = vmatpush1.bf16.msra.mxu0 %v2208
    %2231 = vmatprep.subr.bf16.mxu0 0
    %2232 = vmatpush1.bf16.msra.mxu0 %v2209
    %2233 = vmatprep.subr.bf16.mxu0 0
    %2234 = vmatpush1.bf16.msra.mxu0 %v2210
    %2235 = vmatprep.subr.bf16.mxu0 0
    %2236 = vmatpush1.bf16.msra.mxu0 0
    %2237 = vmatprep.subr.bf16.mxu0 0
    %2238 = vmatpush1.bf16.msra.mxu0 0
    %2239 = vmatprep.subr.bf16.mxu0 0
    %2240 = vmatpush1.bf16.msra.mxu0 0
    %2241 = vmatprep.subr.bf16.mxu0 0
    %2242 = vmatpush1.bf16.msra.mxu0 0
    %2243 = vmatprep.subr.bf16.mxu0 0
    %2244 = vmatpush1.bf16.msra.mxu0 0
    %2245 = vmatprep.subr.bf16.mxu0 0
    %2246 = vmatpush1.bf16.msra.mxu0 0
    %2247 = vmatprep.subr.bf16.mxu0 0
    %2248 = vmatpush1.bf16.msra.mxu0 0
    %2249 = vmatprep.subr.bf16.mxu0 0
    %2250 = vmatpush1.bf16.msra.mxu0 0
    %2251 = vmatprep.mubr.bf16.mxu0 0
    %2252 = vmatmul.mubr.bf16.gmra.mrb[0].mxu0 %v2132
    %v2253 = vpop.f32.mrb[0].mxu0
    %v2254 = vadd.f32 %v2169, %v2253
    %v2255 = vpop.f32.mrb[0].mxu0
    %v2256 = vpop.f32.mrb[0].mxu0
    %v2257 = vadd.f32 %v2169, %v2256
    %v2258 = vpop.f32.mrb[0].mxu0
    %2259 = vmatprep.mubr.bf16.mxu0 0
    %2260 = vmatmul.mubr.bf16.gmra.mrb[0].mxu0 %v2133
    %v2261 = vpop.f32.mrb[0].mxu0
    %v2262 = vadd.f32 %v2169, %v2261
    %v2263 = vpop.f32.mrb[0].mxu0
    %v2264 = vpop.f32.mrb[0].mxu0
    %v2265 = vadd.f32 %v2169, %v2264
    %v2266 = vpop.f32.mrb[0].mxu0
    %2267 = vmatprep.mubr.bf16.mxu0 0
    %2268 = vmatmul.mubr.bf16.gmra.mrb[0].mxu0 %v2134
    %v2269 = vpop.f32.mrb[0].mxu0
    %v2270 = vadd.f32 %v2169, %v2269
    %v2271 = vpop.f32.mrb[0].mxu0
    %v2272 = vpop.f32.mrb[0].mxu0
    %v2273 = vadd.f32 %v2169, %v2272
    %v2274 = vpop.f32.mrb[0].mxu0
    %2275 = vmatprep.mubr.bf16.mxu0 0
    %2276 = vmatmul.mubr.bf16.gmra.mrb[0].mxu0 %v2135
    %v2277 = vpop.f32.mrb[0].mxu0
    %v2278 = vadd.f32 %v2169, %v2277
    %v2279 = vpop.f32.mrb[0].mxu0
    %v2280 = vpop.f32.mrb[0].mxu0
    %v2281 = vadd.f32 %v2169, %v2280
    %v2282 = vpop.f32.mrb[0].mxu0
    %2283 = vmatprep.mubr.bf16.mxu0 0
    %2284 = vmatmul.mubr.bf16.gmra.mrb[0].mxu0 %v2136
    %v2285 = vpop.f32.mrb[0].mxu0
    %v2286 = vadd.f32 %v2169, %v2285
    %v2287 = vpop.f32.mrb[0].mxu0
    %v2288 = vpop.f32.mrb[0].mxu0
    %v2289 = vadd.f32 %v2169, %v2288
    %v2290 = vpop.f32.mrb[0].mxu0
    %2291 = vmatprep.mubr.bf16.mxu0 0
    %2292 = vmatmul.mubr.bf16.gmra.mrb[0].mxu0 %v2137
    %v2293 = vpop.f32.mrb[0].mxu0
    %v2294 = vadd.f32 %v2169, %v2293
    %v2295 = vpop.f32.mrb[0].mxu0
    %v2296 = vpop.f32.mrb[0].mxu0
    %v2297 = vadd.f32 %v2169, %v2296
    %v2298 = vpop.f32.mrb[0].mxu0
    %2299 = vmatprep.mubr.bf16.mxu0 0
    %2300 = vmatmul.mubr.bf16.gmra.mrb[0].mxu0 %v2138
    %v2301 = vpop.f32.mrb[0].mxu0
    %v2302 = vadd.f32 %v2169, %v2301
    %v2303 = vpop.f32.mrb[0].mxu0
    %v2304 = vpop.f32.mrb[0].mxu0
    %v2305 = vadd.f32 %v2169, %v2304
    %v2306 = vpop.f32.mrb[0].mxu0
    %2307 = vmatprep.mubr.bf16.mxu0 0
    %2308 = vmatmul.mubr.bf16.gmra.mrb[0].mxu0 %v2139
    %v2309 = vpop.f32.mrb[0].mxu0
    %v2310 = vadd.f32 %v2169, %v2309
    %v2311 = vpop.f32.mrb[0].mxu0
    %v2312 = vpop.f32.mrb[0].mxu0
    %v2313 = vadd.f32 %v2169, %v2312
    %v2314 = vpop.f32.mrb[0].mxu0
    %2315 = vmatprep.mubr.bf16.mxu0 0
    %2316 = vmatmul.mubr.bf16.gmra.mrb[0].mxu0 %v2140
    %v2317 = vpop.f32.mrb[0].mxu0
    %v2318 = vadd.f32 %v2169, %v2317
    %v2319 = vpop.f32.mrb[0].mxu0
    %v2320 = vpop.f32.mrb[0].mxu0
    %v2321 = vadd.f32 %v2169, %v2320
    %v2322 = vpop.f32.mrb[0].mxu0
    %2323 = vmatprep.mubr.bf16.mxu0 0
    %2324 = vmatmul.mubr.bf16.gmra.mrb[0].mxu0 %v2141
    %v2325 = vpop.f32.mrb[0].mxu0
    %v2326 = vadd.f32 %v2169, %v2325
    %v2327 = vpop.f32.mrb[0].mxu0
    %v2328 = vpop.f32.mrb[0].mxu0
    %v2329 = vadd.f32 %v2169, %v2328
    %v2330 = vpop.f32.mrb[0].mxu0
    %2331 = vmatprep.mubr.bf16.mxu0 0
    %2332 = vmatmul.mubr.bf16.gmra.mrb[0].mxu0 %v2142
    %v2333 = vpop.f32.mrb[0].mxu0
    %v2334 = vadd.f32 %v2169, %v2333
    %v2335 = vpop.f32.mrb[0].mxu0
    %v2336 = vpop.f32.mrb[0].mxu0
    %v2337 = vadd.f32 %v2169, %v2336
    %v2338 = vpop.f32.mrb[0].mxu0
    %2339 = vmatprep.mubr.bf16.mxu0 0
    %2340 = vmatmul.mubr.bf16.gmra.mrb[0].mxu0 %v2143
    %v2341 = vpop.f32.mrb[0].mxu0
    %v2342 = vadd.f32 %v2169, %v2341
    %v2343 = vpop.f32.mrb[0].mxu0
    %v2344 = vpop.f32.mrb[0].mxu0
    %v2345 = vadd.f32 %v2169, %v2344
    %v2346 = vpop.f32.mrb[0].mxu0
    %2347 = vmatprep.mubr.bf16.mxu0 0
    %2348 = vmatmul.mubr.bf16.gmra.mrb[0].mxu0 %v2144
    %v2349 = vpop.f32.mrb[0].mxu0
    %v2350 = vadd.f32 %v2169, %v2349
    %v2351 = vpop.f32.mrb[0].mxu0
    %v2352 = vpop.f32.mrb[0].mxu0
    %v2353 = vadd.f32 %v2169, %v2352
    %v2354 = vpop.f32.mrb[0].mxu0
    %2355 = vmatprep.mubr.bf16.mxu0 0
    %2356 = vmatmul.mubr.bf16.gmra.mrb[0].mxu0 %v2145
    %v2357 = vpop.f32.mrb[0].mxu0
    %v2358 = vadd.f32 %v2169, %v2357
    %v2359 = vpop.f32.mrb[0].mxu0
    %v2360 = vpop.f32.mrb[0].mxu0
    %v2361 = vadd.f32 %v2169, %v2360
    %v2362 = vpop.f32.mrb[0].mxu0
    %2363 = vmatprep.mubr.bf16.mxu0 0
    %2364 = vmatmul.mubr.bf16.gmra.mrb[0].mxu0 %v2146
    %v2365 = vpop.f32.mrb[0].mxu0
    %v2366 = vadd.f32 %v2169, %v2365
    %v2367 = vpop.f32.mrb[0].mxu0
    %v2368 = vpop.f32.mrb[0].mxu0
    %v2369 = vadd.f32 %v2169, %v2368
    %v2370 = vpop.f32.mrb[0].mxu0
    %2371 = vmatprep.mubr.bf16.mxu0 0
    %2372 = vmatmul.mubr.bf16.gmra.mrb[0].mxu0 %v2147
    %v2373 = vpop.f32.mrb[0].mxu0
    %v2374 = vadd.f32 %v2169, %v2373
    %v2375 = vpop.f32.mrb[0].mxu0
    %v2376 = vpop.f32.mrb[0].mxu0
    %v2377 = vadd.f32 %v2169, %v2376
    %v2378 = vpop.f32.mrb[0].mxu0
    %2379 = vdwg.mxu0
    %v2380 = vmax.f32 %v2254, 0.0
    %v2381 = vmax.f32 %v2257, 0.0
    %v2382 = vmax.f32 %v2262, 0.0
    %v2383 = vmax.f32 %v2265, 0.0
    %v2384 = vmax.f32 %v2270, 0.0
    %v2385 = vmax.f32 %v2273, 0.0
    %v2386 = vmax.f32 %v2278, 0.0
    %v2387 = vmax.f32 %v2281, 0.0
    %v2388 = vmax.f32 %v2286, 0.0
    %v2389 = vmax.f32 %v2289, 0.0
    %v2390 = vmax.f32 %v2294, 0.0
    %v2391 = vmax.f32 %v2297, 0.0
    %v2392 = vmax.f32 %v2302, 0.0
    %v2393 = vmax.f32 %v2305, 0.0
    %v2394 = vmax.f32 %v2310, 0.0
    %v2395 = vmax.f32 %v2313, 0.0
    %v2396 = vmax.f32 %v2318, 0.0
    %v2397 = vmax.f32 %v2321, 0.0
    %v2398 = vmax.f32 %v2326, 0.0
    %v2399 = vmax.f32 %v2329, 0.0
    %v2400 = vmax.f32 %v2334, 0.0
    %v2401 = vmax.f32 %v2337, 0.0
    %v2402 = vmax.f32 %v2342, 0.0
    %v2403 = vmax.f32 %v2345, 0.0
    %v2404 = vmax.f32 %v2350, 0.0
    %v2405 = vmax.f32 %v2353, 0.0
    %v2406 = vmax.f32 %v2358, 0.0
    %v2407 = vmax.f32 %v2361, 0.0
    %v2408 = vmax.f32 %v2366, 0.0
    %v2409 = vmax.f32 %v2369, 0.0
    %v2410 = vmax.f32 %v2374, 0.0
    %v2411 = vmax.f32 %v2377, 0.0
    %v2412 = vpack.c.bf16 %v2381, %v2380
    %v2413 = vpack.c.bf16 %v2383, %v2382
    %v2414 = vpack.c.bf16 %v2385, %v2384
    %v2415 = vpack.c.bf16 %v2387, %v2386
    %v2416 = vpack.c.bf16 %v2389, %v2388
    %v2417 = vpack.c.bf16 %v2391, %v2390
    %v2418 = vpack.c.bf16 %v2393, %v2392
    %v2419 = vpack.c.bf16 %v2395, %v2394
    %v2420 = vpack.c.bf16 %v2397, %v2396
    %v2421 = vpack.c.bf16 %v2399, %v2398
    %v2422 = vpack.c.bf16 %v2401, %v2400
    %v2423 = vpack.c.bf16 %v2403, %v2402
    %v2424 = vpack.c.bf16 %v2405, %v2404
    %v2425 = vpack.c.bf16 %v2407, %v2406
    %v2426 = vpack.c.bf16 %v2409, %v2408
    %v2427 = vpack.c.bf16 %v2411, %v2410
    %v2428 = vld [vmem:[%s9] sm:$0xf]
    %v2429 = vld [vmem:[%s9 + $0x4] sm:$0xf]
    %v2430 = vld [vmem:[%s9 + $0x8] sm:$0xf]
    %v2431 = vld [vmem:[%s9 + $0xc] sm:$0xf]
    %v2432 = vld [vmem:[%s9 + $0x10] sm:$0xf]
    %v2433 = vld [vmem:[%s9 + $0x14] sm:$0xf]
    %v2434 = vld [vmem:[%s9 + $0x18] sm:$0xf]
    %v2435 = vld [vmem:[%s9 + $0x1c] sm:$0xf]
    %v2436 = vld [vmem:[%s10] sm:$0x1]
    %v2438 = vlaneseq
    %v2439 = vshrl.u32 %v2438, 7
    %v2440 = vsub.s32 0, %v2439
    %v2441 = vrot.slane %v2436, %v2440
    %v2451 = vunpack.c.l.b16 %v2428
    %v2452 = vunpack.c.l.b16 %v2429
    %v2453 = vunpack.c.l.b16 %v2430
    %v2454 = vunpack.c.l.b16 %v2431
    %v2455 = vunpack.c.l.b16 %v2432
    %v2456 = vunpack.c.l.b16 %v2433
    %v2457 = vunpack.c.l.b16 %v2434
    %v2458 = vunpack.c.l.b16 %v2435
    %v2459 = vpack.c.b16 %v2452, %v2451
    %v2460 = vpack.c.b16 %v2454, %v2453
    %v2461 = vpack.c.b16 %v2456, %v2455
    %v2462 = vpack.c.b16 %v2458, %v2457
    %vm2467 = vcmask 523264
    %v2469 = vsel %vm2467, %v2412, 0
    %v2472 = vsel %vm2467, %v2413, 0
    %v2475 = vsel %vm2467, %v2414, 0
    %v2478 = vsel %vm2467, %v2415, 0
    %v2481 = vsel %vm2467, %v2416, 0
    %v2484 = vsel %vm2467, %v2417, 0
    %v2487 = vsel %vm2467, %v2418, 0
    %v2490 = vsel %vm2467, %v2419, 0
    %v2493 = vsel %vm2467, %v2420, 0
    %v2496 = vsel %vm2467, %v2421, 0
    %v2499 = vsel %vm2467, %v2422, 0
    %v2502 = vsel %vm2467, %v2423, 0
    %v2505 = vsel %vm2467, %v2424, 0
    %v2508 = vsel %vm2467, %v2425, 0
    %v2511 = vsel %vm2467, %v2426, 0
    %v2514 = vsel %vm2467, %v2427, 0
    %2516 = vmatprep.subr.bf16.mxu0 0
    %2517 = vmatpush1.bf16.msra.mxu0 %v2459
    %2518 = vmatprep.subr.bf16.mxu0 0
    %2519 = vmatpush1.bf16.msra.mxu0 %v2460
    %2520 = vmatprep.subr.bf16.mxu0 0
    %2521 = vmatpush1.bf16.msra.mxu0 %v2461
    %2522 = vmatprep.subr.bf16.mxu0 0
    %2523 = vmatpush1.bf16.msra.mxu0 %v2462
    %2524 = vmatprep.subr.bf16.mxu0 0
    %2525 = vmatpush1.bf16.msra.mxu0 0
    %2526 = vmatprep.subr.bf16.mxu0 0
    %2527 = vmatpush1.bf16.msra.mxu0 0
    %2528 = vmatprep.subr.bf16.mxu0 0
    %2529 = vmatpush1.bf16.msra.mxu0 0
    %2530 = vmatprep.subr.bf16.mxu0 0
    %2531 = vmatpush1.bf16.msra.mxu0 0
    %2532 = vmatprep.subr.bf16.mxu0 0
    %2533 = vmatpush1.bf16.msra.mxu0 0
    %2534 = vmatprep.subr.bf16.mxu0 0
    %2535 = vmatpush1.bf16.msra.mxu0 0
    %2536 = vmatprep.subr.bf16.mxu0 0
    %2537 = vmatpush1.bf16.msra.mxu0 0
    %2538 = vmatprep.subr.bf16.mxu0 0
    %2539 = vmatpush1.bf16.msra.mxu0 0
    %2540 = vmatprep.subr.bf16.mxu0 0
    %2541 = vmatpush1.bf16.msra.mxu0 0
    %2542 = vmatprep.subr.bf16.mxu0 0
    %2543 = vmatpush1.bf16.msra.mxu0 0
    %2544 = vmatprep.subr.bf16.mxu0 0
    %2545 = vmatpush1.bf16.msra.mxu0 0
    %2546 = vmatprep.subr.bf16.mxu0 0
    %2547 = vmatpush1.bf16.msra.mxu0 0
    %2548 = vmatprep.mubr.bf16.mxu0 0
    %2549 = vmatmul.mubr.bf16.gmra.mrb[0].mxu0 %v2469
    %v2550 = vpop.f32.mrb[0].mxu0
    %v2551 = vadd.f32 %v2441, %v2550
    %v2552 = vpop.f32.mrb[0].mxu0
    %v2553 = vpop.f32.mrb[0].mxu0
    %v2554 = vadd.f32 %v2441, %v2553
    %v2555 = vpop.f32.mrb[0].mxu0
    %2556 = vmatprep.mubr.bf16.mxu0 0
    %2557 = vmatmul.mubr.bf16.gmra.mrb[0].mxu0 %v2472
    %v2558 = vpop.f32.mrb[0].mxu0
    %v2559 = vadd.f32 %v2441, %v2558
    %v2560 = vpop.f32.mrb[0].mxu0
    %v2561 = vpop.f32.mrb[0].mxu0
    %v2562 = vadd.f32 %v2441, %v2561
    %v2563 = vpop.f32.mrb[0].mxu0
    %2564 = vmatprep.mubr.bf16.mxu0 0
    %2565 = vmatmul.mubr.bf16.gmra.mrb[0].mxu0 %v2475
    %v2566 = vpop.f32.mrb[0].mxu0
    %v2567 = vadd.f32 %v2441, %v2566
    %v2568 = vpop.f32.mrb[0].mxu0
    %v2569 = vpop.f32.mrb[0].mxu0
    %v2570 = vadd.f32 %v2441, %v2569
    %v2571 = vpop.f32.mrb[0].mxu0
    %2572 = vmatprep.mubr.bf16.mxu0 0
    %2573 = vmatmul.mubr.bf16.gmra.mrb[0].mxu0 %v2478
    %v2574 = vpop.f32.mrb[0].mxu0
    %v2575 = vadd.f32 %v2441, %v2574
    %v2576 = vpop.f32.mrb[0].mxu0
    %v2577 = vpop.f32.mrb[0].mxu0
    %v2578 = vadd.f32 %v2441, %v2577
    %v2579 = vpop.f32.mrb[0].mxu0
    %2580 = vmatprep.mubr.bf16.mxu0 0
    %2581 = vmatmul.mubr.bf16.gmra.mrb[0].mxu0 %v2481
    %v2582 = vpop.f32.mrb[0].mxu0
    %v2583 = vadd.f32 %v2441, %v2582
    %v2584 = vpop.f32.mrb[0].mxu0
    %v2585 = vpop.f32.mrb[0].mxu0
    %v2586 = vadd.f32 %v2441, %v2585
    %v2587 = vpop.f32.mrb[0].mxu0
    %2588 = vmatprep.mubr.bf16.mxu0 0
    %2589 = vmatmul.mubr.bf16.gmra.mrb[0].mxu0 %v2484
    %v2590 = vpop.f32.mrb[0].mxu0
    %v2591 = vadd.f32 %v2441, %v2590
    %v2592 = vpop.f32.mrb[0].mxu0
    %v2593 = vpop.f32.mrb[0].mxu0
    %v2594 = vadd.f32 %v2441, %v2593
    %v2595 = vpop.f32.mrb[0].mxu0
    %2596 = vmatprep.mubr.bf16.mxu0 0
    %2597 = vmatmul.mubr.bf16.gmra.mrb[0].mxu0 %v2487
    %v2598 = vpop.f32.mrb[0].mxu0
    %v2599 = vadd.f32 %v2441, %v2598
    %v2600 = vpop.f32.mrb[0].mxu0
    %v2601 = vpop.f32.mrb[0].mxu0
    %v2602 = vadd.f32 %v2441, %v2601
    %v2603 = vpop.f32.mrb[0].mxu0
    %2604 = vmatprep.mubr.bf16.mxu0 0
    %2605 = vmatmul.mubr.bf16.gmra.mrb[0].mxu0 %v2490
    %v2606 = vpop.f32.mrb[0].mxu0
    %v2607 = vadd.f32 %v2441, %v2606
    %v2608 = vpop.f32.mrb[0].mxu0
    %v2609 = vpop.f32.mrb[0].mxu0
    %v2610 = vadd.f32 %v2441, %v2609
    %v2611 = vpop.f32.mrb[0].mxu0
    %2612 = vmatprep.mubr.bf16.mxu0 0
    %2613 = vmatmul.mubr.bf16.gmra.mrb[0].mxu0 %v2493
    %v2614 = vpop.f32.mrb[0].mxu0
    %v2615 = vadd.f32 %v2441, %v2614
    %v2616 = vpop.f32.mrb[0].mxu0
    %v2617 = vpop.f32.mrb[0].mxu0
    %v2618 = vadd.f32 %v2441, %v2617
    %v2619 = vpop.f32.mrb[0].mxu0
    %2620 = vmatprep.mubr.bf16.mxu0 0
    %2621 = vmatmul.mubr.bf16.gmra.mrb[0].mxu0 %v2496
    %v2622 = vpop.f32.mrb[0].mxu0
    %v2623 = vadd.f32 %v2441, %v2622
    %v2624 = vpop.f32.mrb[0].mxu0
    %v2625 = vpop.f32.mrb[0].mxu0
    %v2626 = vadd.f32 %v2441, %v2625
    %v2627 = vpop.f32.mrb[0].mxu0
    %2628 = vmatprep.mubr.bf16.mxu0 0
    %2629 = vmatmul.mubr.bf16.gmra.mrb[0].mxu0 %v2499
    %v2630 = vpop.f32.mrb[0].mxu0
    %v2631 = vadd.f32 %v2441, %v2630
    %v2632 = vpop.f32.mrb[0].mxu0
    %v2633 = vpop.f32.mrb[0].mxu0
    %v2634 = vadd.f32 %v2441, %v2633
    %v2635 = vpop.f32.mrb[0].mxu0
    %2636 = vmatprep.mubr.bf16.mxu0 0
    %2637 = vmatmul.mubr.bf16.gmra.mrb[0].mxu0 %v2502
    %v2638 = vpop.f32.mrb[0].mxu0
    %v2639 = vadd.f32 %v2441, %v2638
    %v2640 = vpop.f32.mrb[0].mxu0
    %v2641 = vpop.f32.mrb[0].mxu0
    %v2642 = vadd.f32 %v2441, %v2641
    %v2643 = vpop.f32.mrb[0].mxu0
    %2644 = vmatprep.mubr.bf16.mxu0 0
    %2645 = vmatmul.mubr.bf16.gmra.mrb[0].mxu0 %v2505
    %v2646 = vpop.f32.mrb[0].mxu0
    %v2647 = vadd.f32 %v2441, %v2646
    %v2648 = vpop.f32.mrb[0].mxu0
    %v2649 = vpop.f32.mrb[0].mxu0
    %v2650 = vadd.f32 %v2441, %v2649
    %v2651 = vpop.f32.mrb[0].mxu0
    %2652 = vmatprep.mubr.bf16.mxu0 0
    %2653 = vmatmul.mubr.bf16.gmra.mrb[0].mxu0 %v2508
    %v2654 = vpop.f32.mrb[0].mxu0
    %v2655 = vadd.f32 %v2441, %v2654
    %v2656 = vpop.f32.mrb[0].mxu0
    %v2657 = vpop.f32.mrb[0].mxu0
    %v2658 = vadd.f32 %v2441, %v2657
    %v2659 = vpop.f32.mrb[0].mxu0
    %2660 = vmatprep.mubr.bf16.mxu0 0
    %2661 = vmatmul.mubr.bf16.gmra.mrb[0].mxu0 %v2511
    %v2662 = vpop.f32.mrb[0].mxu0
    %v2663 = vadd.f32 %v2441, %v2662
    %v2664 = vpop.f32.mrb[0].mxu0
    %v2665 = vpop.f32.mrb[0].mxu0
    %v2666 = vadd.f32 %v2441, %v2665
    %v2667 = vpop.f32.mrb[0].mxu0
    %2668 = vmatprep.mubr.bf16.mxu0 0
    %2669 = vmatmul.mubr.bf16.gmra.mrb[0].mxu0 %v2514
    %v2670 = vpop.f32.mrb[0].mxu0
    %v2671 = vadd.f32 %v2441, %v2670
    %v2672 = vpop.f32.mrb[0].mxu0
    %v2673 = vpop.f32.mrb[0].mxu0
    %v2674 = vadd.f32 %v2441, %v2673
    %v2675 = vpop.f32.mrb[0].mxu0
    %2676 = vdwg.mxu0
    %v2677 = vmax.f32 %v2551, 0.0
    %v2678 = vmax.f32 %v2554, 0.0
    %v2679 = vmax.f32 %v2559, 0.0
    %v2680 = vmax.f32 %v2562, 0.0
    %v2681 = vmax.f32 %v2567, 0.0
    %v2682 = vmax.f32 %v2570, 0.0
    %v2683 = vmax.f32 %v2575, 0.0
    %v2684 = vmax.f32 %v2578, 0.0
    %v2685 = vmax.f32 %v2583, 0.0
    %v2686 = vmax.f32 %v2586, 0.0
    %v2687 = vmax.f32 %v2591, 0.0
    %v2688 = vmax.f32 %v2594, 0.0
    %v2689 = vmax.f32 %v2599, 0.0
    %v2690 = vmax.f32 %v2602, 0.0
    %v2691 = vmax.f32 %v2607, 0.0
    %v2692 = vmax.f32 %v2610, 0.0
    %v2693 = vmax.f32 %v2615, 0.0
    %v2694 = vmax.f32 %v2618, 0.0
    %v2695 = vmax.f32 %v2623, 0.0
    %v2696 = vmax.f32 %v2626, 0.0
    %v2697 = vmax.f32 %v2631, 0.0
    %v2698 = vmax.f32 %v2634, 0.0
    %v2699 = vmax.f32 %v2639, 0.0
    %v2700 = vmax.f32 %v2642, 0.0
    %v2701 = vmax.f32 %v2647, 0.0
    %v2702 = vmax.f32 %v2650, 0.0
    %v2703 = vmax.f32 %v2655, 0.0
    %v2704 = vmax.f32 %v2658, 0.0
    %v2705 = vmax.f32 %v2663, 0.0
    %v2706 = vmax.f32 %v2666, 0.0
    %v2707 = vmax.f32 %v2671, 0.0
    %v2708 = vmax.f32 %v2674, 0.0
    %v2709 = vld [vmem:[%s11] sm:$0x1]
    %v2711 = vlaneseq
    %v2712 = vshrl.u32 %v2711, 7
    %v2713 = vsub.s32 0, %v2712
    %v2714 = vrot.slane %v2709, %v2713
    %v2716 = vmul.f32 %v2677, %v2714
    %v2717 = vmul.f32 %v2678, %v2714
    %v2718 = vmul.f32 %v2679, %v2714
    %v2719 = vmul.f32 %v2680, %v2714
    %v2720 = vmul.f32 %v2681, %v2714
    %v2721 = vmul.f32 %v2682, %v2714
    %v2722 = vmul.f32 %v2683, %v2714
    %v2723 = vmul.f32 %v2684, %v2714
    %v2724 = vmul.f32 %v2685, %v2714
    %v2725 = vmul.f32 %v2686, %v2714
    %v2726 = vmul.f32 %v2687, %v2714
    %v2727 = vmul.f32 %v2688, %v2714
    %v2728 = vmul.f32 %v2689, %v2714
    %v2729 = vmul.f32 %v2690, %v2714
    %v2730 = vmul.f32 %v2691, %v2714
    %v2731 = vmul.f32 %v2692, %v2714
    %v2732 = vmul.f32 %v2693, %v2714
    %v2733 = vmul.f32 %v2694, %v2714
    %v2734 = vmul.f32 %v2695, %v2714
    %v2735 = vmul.f32 %v2696, %v2714
    %v2736 = vmul.f32 %v2697, %v2714
    %v2737 = vmul.f32 %v2698, %v2714
    %v2738 = vmul.f32 %v2699, %v2714
    %v2739 = vmul.f32 %v2700, %v2714
    %v2740 = vmul.f32 %v2701, %v2714
    %v2741 = vmul.f32 %v2702, %v2714
    %v2742 = vmul.f32 %v2703, %v2714
    %v2743 = vmul.f32 %v2704, %v2714
    %v2744 = vmul.f32 %v2705, %v2714
    %v2745 = vmul.f32 %v2706, %v2714
    %v2746 = vmul.f32 %v2707, %v2714
    %v2747 = vmul.f32 %v2708, %v2714
    %vm2748 = vcmask 261120
    %v2749 = vsel %vm2748, %v2716, 0.0
    %2750 = vadd.xlane.f32.xlu0 %v2749
    %v2751 = vpop.xlane.xlu0 %2750
    %v2752 = vsel %vm2748, %v2717, 0.0
    %2753 = vadd.xlane.f32.xlu0 %v2752
    %v2754 = vpop.xlane.xlu0 %2753
    %v2755 = vsel %vm2748, %v2718, 0.0
    %2756 = vadd.xlane.f32.xlu0 %v2755
    %v2757 = vpop.xlane.xlu0 %2756
    %v2758 = vsel %vm2748, %v2719, 0.0
    %2759 = vadd.xlane.f32.xlu0 %v2758
    %v2760 = vpop.xlane.xlu0 %2759
    %v2761 = vsel %vm2748, %v2720, 0.0
    %2762 = vadd.xlane.f32.xlu0 %v2761
    %v2763 = vpop.xlane.xlu0 %2762
    %v2764 = vsel %vm2748, %v2721, 0.0
    %2765 = vadd.xlane.f32.xlu0 %v2764
    %v2766 = vpop.xlane.xlu0 %2765
    %v2767 = vsel %vm2748, %v2722, 0.0
    %2768 = vadd.xlane.f32.xlu0 %v2767
    %v2769 = vpop.xlane.xlu0 %2768
    %v2770 = vsel %vm2748, %v2723, 0.0
    %2771 = vadd.xlane.f32.xlu0 %v2770
    %v2772 = vpop.xlane.xlu0 %2771
    %v2773 = vsel %vm2748, %v2724, 0.0
    %2774 = vadd.xlane.f32.xlu0 %v2773
    %v2775 = vpop.xlane.xlu0 %2774
    %v2776 = vsel %vm2748, %v2725, 0.0
    %2777 = vadd.xlane.f32.xlu0 %v2776
    %v2778 = vpop.xlane.xlu0 %2777
    %v2779 = vsel %vm2748, %v2726, 0.0
    %2780 = vadd.xlane.f32.xlu0 %v2779
    %v2781 = vpop.xlane.xlu0 %2780
    %v2782 = vsel %vm2748, %v2727, 0.0
    %2783 = vadd.xlane.f32.xlu0 %v2782
    %v2784 = vpop.xlane.xlu0 %2783
    %v2785 = vsel %vm2748, %v2728, 0.0
    %2786 = vadd.xlane.f32.xlu0 %v2785
    %v2787 = vpop.xlane.xlu0 %2786
    %v2788 = vsel %vm2748, %v2729, 0.0
    %2789 = vadd.xlane.f32.xlu0 %v2788
    %v2790 = vpop.xlane.xlu0 %2789
    %v2791 = vsel %vm2748, %v2730, 0.0
    %2792 = vadd.xlane.f32.xlu0 %v2791
    %v2793 = vpop.xlane.xlu0 %2792
    %v2794 = vsel %vm2748, %v2731, 0.0
    %2795 = vadd.xlane.f32.xlu0 %v2794
    %v2796 = vpop.xlane.xlu0 %2795
    %v2797 = vsel %vm2748, %v2732, 0.0
    %2798 = vadd.xlane.f32.xlu0 %v2797
    %v2799 = vpop.xlane.xlu0 %2798
    %v2800 = vsel %vm2748, %v2733, 0.0
    %2801 = vadd.xlane.f32.xlu0 %v2800
    %v2802 = vpop.xlane.xlu0 %2801
    %v2803 = vsel %vm2748, %v2734, 0.0
    %2804 = vadd.xlane.f32.xlu0 %v2803
    %v2805 = vpop.xlane.xlu0 %2804
    %v2806 = vsel %vm2748, %v2735, 0.0
    %2807 = vadd.xlane.f32.xlu0 %v2806
    %v2808 = vpop.xlane.xlu0 %2807
    %v2809 = vsel %vm2748, %v2736, 0.0
    %2810 = vadd.xlane.f32.xlu0 %v2809
    %v2811 = vpop.xlane.xlu0 %2810
    %v2812 = vsel %vm2748, %v2737, 0.0
    %2813 = vadd.xlane.f32.xlu0 %v2812
    %v2814 = vpop.xlane.xlu0 %2813
    %v2815 = vsel %vm2748, %v2738, 0.0
    %2816 = vadd.xlane.f32.xlu0 %v2815
    %v2817 = vpop.xlane.xlu0 %2816
    %v2818 = vsel %vm2748, %v2739, 0.0
    %2819 = vadd.xlane.f32.xlu0 %v2818
    %v2820 = vpop.xlane.xlu0 %2819
    %v2821 = vsel %vm2748, %v2740, 0.0
    %2822 = vadd.xlane.f32.xlu0 %v2821
    %v2823 = vpop.xlane.xlu0 %2822
    %v2824 = vsel %vm2748, %v2741, 0.0
    %2825 = vadd.xlane.f32.xlu0 %v2824
    %v2826 = vpop.xlane.xlu0 %2825
    %v2827 = vsel %vm2748, %v2742, 0.0
    %2828 = vadd.xlane.f32.xlu0 %v2827
    %v2829 = vpop.xlane.xlu0 %2828
    %v2830 = vsel %vm2748, %v2743, 0.0
    %2831 = vadd.xlane.f32.xlu0 %v2830
    %v2832 = vpop.xlane.xlu0 %2831
    %v2833 = vsel %vm2748, %v2744, 0.0
    %2834 = vadd.xlane.f32.xlu0 %v2833
    %v2835 = vpop.xlane.xlu0 %2834
    %v2836 = vsel %vm2748, %v2745, 0.0
    %2837 = vadd.xlane.f32.xlu0 %v2836
    %v2838 = vpop.xlane.xlu0 %2837
    %v2839 = vsel %vm2748, %v2746, 0.0
    %2840 = vadd.xlane.f32.xlu0 %v2839
    %v2841 = vpop.xlane.xlu0 %2840
    %v2842 = vsel %vm2748, %v2747, 0.0
    %2843 = vadd.xlane.f32.xlu0 %v2842
    %v2844 = vpop.xlane.xlu0 %2843
    %v2845 = vld [vmem:[#allocation2] sm:$0x1]
    %v2847 = vlaneseq
    %v2848 = vshrl.u32 %v2847, 7
    %v2849 = vsub.s32 0, %v2848
    %v2850 = vrot.slane %v2845, %v2849
    %v2852 = vadd.f32 %v2751, %v2850
    %v2853 = vadd.f32 %v2754, %v2850
    %v2854 = vadd.f32 %v2757, %v2850
    %v2855 = vadd.f32 %v2760, %v2850
    %v2856 = vadd.f32 %v2763, %v2850
    %v2857 = vadd.f32 %v2766, %v2850
    %v2858 = vadd.f32 %v2769, %v2850
    %v2859 = vadd.f32 %v2772, %v2850
    %v2860 = vadd.f32 %v2775, %v2850
    %v2861 = vadd.f32 %v2778, %v2850
    %v2862 = vadd.f32 %v2781, %v2850
    %v2863 = vadd.f32 %v2784, %v2850
    %v2864 = vadd.f32 %v2787, %v2850
    %v2865 = vadd.f32 %v2790, %v2850
    %v2866 = vadd.f32 %v2793, %v2850
    %v2867 = vadd.f32 %v2796, %v2850
    %v2868 = vadd.f32 %v2799, %v2850
    %v2869 = vadd.f32 %v2802, %v2850
    %v2870 = vadd.f32 %v2805, %v2850
    %v2871 = vadd.f32 %v2808, %v2850
    %v2872 = vadd.f32 %v2811, %v2850
    %v2873 = vadd.f32 %v2814, %v2850
    %v2874 = vadd.f32 %v2817, %v2850
    %v2875 = vadd.f32 %v2820, %v2850
    %v2876 = vadd.f32 %v2823, %v2850
    %v2877 = vadd.f32 %v2826, %v2850
    %v2878 = vadd.f32 %v2829, %v2850
    %v2879 = vadd.f32 %v2832, %v2850
    %v2880 = vadd.f32 %v2835, %v2850
    %v2881 = vadd.f32 %v2838, %v2850
    %v2882 = vadd.f32 %v2841, %v2850
    %v2883 = vadd.f32 %v2844, %v2850
    %vm2884 = vcmask 7168
    %2885 = vst.msk [vmem:[%s13] sm:$0xff] %vm2884, %v2852
    %2886 = vst.msk [vmem:[%s13 + $0x8] sm:$0xff] %vm2884, %v2853
    %2887 = vst.msk [vmem:[%s13 + $0x10] sm:$0xff] %vm2884, %v2854
    %2888 = vst.msk [vmem:[%s13 + $0x18] sm:$0xff] %vm2884, %v2855
    %2889 = vst.msk [vmem:[%s13 + $0x20] sm:$0xff] %vm2884, %v2856
    %2890 = vst.msk [vmem:[%s13 + $0x28] sm:$0xff] %vm2884, %v2857
    %2891 = vst.msk [vmem:[%s13 + $0x30] sm:$0xff] %vm2884, %v2858
    %2892 = vst.msk [vmem:[%s13 + $0x38] sm:$0xff] %vm2884, %v2859
    %2893 = vst.msk [vmem:[%s13 + $0x40] sm:$0xff] %vm2884, %v2860
    %2894 = vst.msk [vmem:[%s13 + $0x48] sm:$0xff] %vm2884, %v2861
    %2895 = vst.msk [vmem:[%s13 + $0x50] sm:$0xff] %vm2884, %v2862
    %2896 = vst.msk [vmem:[%s13 + $0x58] sm:$0xff] %vm2884, %v2863
    %2897 = vst.msk [vmem:[%s13 + $0x60] sm:$0xff] %vm2884, %v2864
    %2898 = vst.msk [vmem:[%s13 + $0x68] sm:$0xff] %vm2884, %v2865
    %2899 = vst.msk [vmem:[%s13 + $0x70] sm:$0xff] %vm2884, %v2866
    %2900 = vst.msk [vmem:[%s13 + $0x78] sm:$0xff] %vm2884, %v2867
    %2901 = vst.msk [vmem:[%s13 + $0x80] sm:$0xff] %vm2884, %v2868
    %2902 = vst.msk [vmem:[%s13 + $0x88] sm:$0xff] %vm2884, %v2869
    %2903 = vst.msk [vmem:[%s13 + $0x90] sm:$0xff] %vm2884, %v2870
    %2904 = vst.msk [vmem:[%s13 + $0x98] sm:$0xff] %vm2884, %v2871
    %2905 = vst.msk [vmem:[%s13 + $0xa0] sm:$0xff] %vm2884, %v2872
    %2906 = vst.msk [vmem:[%s13 + $0xa8] sm:$0xff] %vm2884, %v2873
    %2907 = vst.msk [vmem:[%s13 + $0xb0] sm:$0xff] %vm2884, %v2874
    %2908 = vst.msk [vmem:[%s13 + $0xb8] sm:$0xff] %vm2884, %v2875
    %2909 = vst.msk [vmem:[%s13 + $0xc0] sm:$0xff] %vm2884, %v2876
    %2910 = vst.msk [vmem:[%s13 + $0xc8] sm:$0xff] %vm2884, %v2877
    %2911 = vst.msk [vmem:[%s13 + $0xd0] sm:$0xff] %vm2884, %v2878
    %2912 = vst.msk [vmem:[%s13 + $0xd8] sm:$0xff] %vm2884, %v2879
    %2913 = vst.msk [vmem:[%s13 + $0xe0] sm:$0xff] %vm2884, %v2880
    %2914 = vst.msk [vmem:[%s13 + $0xe8] sm:$0xff] %vm2884, %v2881
    %2915 = vst.msk [vmem:[%s13 + $0xf0] sm:$0xff] %vm2884, %v2882
    %2916 = vst.msk [vmem:[%s13 + $0xf8] sm:$0xff] %vm2884, %v2883
    // Predicated region
    $region58: #{tpu_custom_call.1} parent=1 // pred_check
      _
    $region59: #{tpu_custom_call.1} parent=1 // pred_check_branch
      %2918 = sbr.rel (0) target = $region61
    $region60: #{tpu_custom_call.1} parent=1 // pred_region
      _
    $region61: #{tpu_custom_call.1} parent=1 // pred_fallthru
      _
    // Predicated region
    $region62: #{tpu_custom_call.1} parent=1 // pred_check
      _
    $region63: #{tpu_custom_call.1} parent=1 // pred_check_branch
      %2920 = sbr.rel (0) target = $region65
    $region64: #{tpu_custom_call.1} parent=1 // pred_region
      _
    $region65: #{tpu_custom_call.1} parent=1 // pred_fallthru
      _
    %2921 = vsyncpa [#allocation4], 1

</llo_original>
